<compile_context>
chip_gen: v7x
topology: tpu7x:2x2x1
jax: 0.10.0
libtpu: 0.0.40
codegen_flags: <defaults>
</compile_context>

<pallas_src>
import jax
import jax.numpy as jnp
from jax.experimental import pallas as pl
from jax.experimental.pallas import tpu as pltpu

H = 256            # hidden size (in == out for this module)
EPS = 1e-12


def ln_linear_kernel(x_ref, w_hi_ref, w_lo_ref, bias_ref, o_ref):
    # x_ref: (block_rows, H); w_hi/w_lo: (H, H) bf16 (gamma already folded in);
    # bias_ref: (1, H) f32 (beta already folded in).
    x = x_ref[...].astype(jnp.float32)

    # One-pass LayerNorm statistics (biased variance, like torch), clamped >= 0.
    inv_h = jnp.float32(1.0 / H)
    s1 = jnp.sum(x, axis=-1, keepdims=True)
    s2 = jnp.sum(x * x, axis=-1, keepdims=True)
    mean = s1 * inv_h
    var = jnp.maximum(s2 * inv_h - mean * mean, 0.0)
    inv_std = jax.lax.rsqrt(var + EPS)                    # (block_rows, 1)

    # gamma/beta are folded into the weight/bias, so the row path is minimal.
    y = (x - mean) * inv_std                              # (block_rows, H) fp32

    # Explicit bf16_x3 matmul: split the fp32 activations into bf16 hi/lo halves and
    # drop only the lo*lo cross term (error ~2^-18 relative). Weight halves are
    # precomputed, so only three single-pass bf16 MXU matmuls run here.
    y_hi = y.astype(jnp.bfloat16)
    y_lo = (y - y_hi.astype(jnp.float32)).astype(jnp.bfloat16)
    w_hi = w_hi_ref[...]
    w_lo = w_lo_ref[...]
    out = jnp.dot(y_hi, w_hi, preferred_element_type=jnp.float32)
    out = out + jnp.dot(y_lo, w_hi, preferred_element_type=jnp.float32)
    out = out + jnp.dot(y_hi, w_lo, preferred_element_type=jnp.float32)

    out = out + bias_ref[...]                             # (1, H) broadcast
    o_ref[...] = out.astype(o_ref.dtype)


def prepare_params(gamma, beta, weight, bias):
    """One-time parameter folding (do NOT redo per forward call).

    weight: (H_out, H_in) PyTorch convention.
    Returns (w_hi, w_lo, b_fused): bf16 hi/lo halves of gamma[:,None] * W^T, and
    fp32 fused bias beta @ W^T + bias, shaped (1, H_out).
    """
    w_t = weight.T.astype(jnp.float32)                        # (H_in, H_out)
    w_fused = gamma.astype(jnp.float32)[:, None] * w_t        # fold LN gamma
    b_fused = beta.astype(jnp.float32) @ w_t + bias.astype(jnp.float32)  # fold LN beta
    w_hi = w_fused.astype(jnp.bfloat16)
    w_lo = (w_fused - w_hi.astype(jnp.float32)).astype(jnp.bfloat16)
    return w_hi, w_lo, b_fused.reshape(1, w_fused.shape[1])


def layernorm_linear(x, w_hi, w_lo, b_fused, *, block_rows=192):
    """x: (B, S, H). Params come from prepare_params(). Returns (B, S, H_out)."""
    B, S, Hin = x.shape
    assert Hin == H
    rows = B * S
    if rows % block_rows != 0:
        block_rows = rows                                  # fall back to one block
    x2d = x.reshape(rows, H)

    # Advisory cost hint: logical flops / bytes / transcendentals of this call.
    bytes_accessed = (x2d.size * 4) + (w_hi.size * 2) * 2 + (b_fused.size * 4) + (rows * H * 4)
    cost = pl.CostEstimate(
        flops=2 * rows * H * H,
        transcendentals=rows,
        bytes_accessed=bytes_accessed,
    )

    out2d = pl.pallas_call(
        ln_linear_kernel,
        out_shape=jax.ShapeDtypeStruct((rows, H), x.dtype),
        grid_spec=pl.GridSpec(
            grid=(rows // block_rows,),
            in_specs=[
                pl.BlockSpec((block_rows, H), lambda i: (i, 0)),  # x rows (sharded)
                pl.BlockSpec((H, H), lambda i: (0, 0)),           # w_hi (resident)
                pl.BlockSpec((H, H), lambda i: (0, 0)),           # w_lo (resident)
                pl.BlockSpec((1, H), lambda i: (0, 0)),           # fused bias (resident)
            ],
            out_specs=pl.BlockSpec((block_rows, H), lambda i: (i, 0)),
        ),
        compiler_params=pltpu.CompilerParams(
            dimension_semantics=("parallel",)),
        cost_estimate=cost,
    )(x2d, w_hi, w_lo, b_fused)
    return out2d.reshape(B, S, H)


if __name__ == "__main__":
    key = jax.random.PRNGKey(0)
    kx, kw, kb, kg, kbe = jax.random.split(key, 5)

    # Input matching the module: torch.randn([1, 384, 256]).
    x = jax.random.normal(kx, (1, 384, H), dtype=jnp.float32)

    # Deterministic synthetic parameters (not a checkpoint load).
    gamma = jnp.ones((H,), dtype=jnp.float32) + 0.01 * jax.random.normal(kg, (H,))
    beta = 0.01 * jax.random.normal(kbe, (H,), dtype=jnp.float32)
    bound = 1.0 / jnp.sqrt(H)
    weight = jax.random.uniform(kw, (H, H), minval=-bound, maxval=bound, dtype=jnp.float32)
    bias = jax.random.uniform(kb, (H,), minval=-bound, maxval=bound, dtype=jnp.float32)

    # One-time parameter prep (pre-transpose, gamma/beta fold, bf16 hi/lo split).
    w_hi, w_lo, b_fused = prepare_params(gamma, beta, weight, bias)

    out = layernorm_linear(x, w_hi, w_lo, b_fused)
    out = jax.block_until_ready(out)

    # Reference in plain JAX with the ORIGINAL (unfolded) parameters — matches
    # torch.nn.LayerNorm(eps=1e-12) + Linear semantics.
    mean = jnp.mean(x, axis=-1, keepdims=True)
    var = jnp.mean(jnp.square(x - mean), axis=-1, keepdims=True)
    xn = (x - mean) / jnp.sqrt(var + EPS)
    ref = (xn * gamma + beta) @ weight.T + bias

    # bf16_x3 matmul + affine folding keeps error ~1e-5-class; 5e-4 leaves margin.
    tol = 5e-4
    assert jnp.allclose(out, ref, atol=tol, rtol=tol), "mismatch vs reference"

    print("KERNEL_OK")
</pallas_src>

<mosaic_0001>
module attributes {stable_mosaic.version = 11 : i64} {
  func.func @ln_linear_kernel(%arg0: i32, %arg1: memref<192x256xf32, #tpu.memory_space<vmem>>, %arg2: memref<256x256xbf16, #tpu.memory_space<vmem>>, %arg3: memref<256x256xbf16, #tpu.memory_space<vmem>>, %arg4: memref<1x256xf32, #tpu.memory_space<vmem>>, %arg5: memref<192x256xf32, #tpu.memory_space<vmem>>) attributes {dimension_semantics = [#tpu.dimension_semantics<parallel>], iteration_bounds = array<i64: 2>, scalar_prefetch = 0 : i64, scratch_operands = 0 : i64, tpu.core_type = #tpu.core_type<tc>, window_params = [{transform_indices = @transform_0, window_bounds = array<i64: 192, 256>}, {pipeline_mode = #tpu.pipeline_mode<synchronous>, transform_indices = @transform_1, window_bounds = array<i64: 256, 256>}, {pipeline_mode = #tpu.pipeline_mode<synchronous>, transform_indices = @transform_2, window_bounds = array<i64: 256, 256>}, {pipeline_mode = #tpu.pipeline_mode<synchronous>, transform_indices = @transform_3, window_bounds = array<i64: 1, 256>}, {transform_indices = @transform_4, window_bounds = array<i64: 192, 256>}]} {
    %c0 = arith.constant 0 : index
    %c0_0 = arith.constant 0 : index
    %0 = vector.load %arg1[%c0, %c0_0] : memref<192x256xf32, #tpu.memory_space<vmem>>, vector<192x256xf32>
    %cst = arith.constant dense<0.000000e+00> : vector<192xf32>
    %1 = vector.multi_reduction <add>, %0, %cst [1] : vector<192x256xf32> to vector<192xf32>
    %2 = vector.shape_cast %1 : vector<192xf32> to vector<192x1xf32>
    %3 = arith.mulf %0, %0 : vector<192x256xf32>
    %cst_1 = arith.constant dense<0.000000e+00> : vector<192xf32>
    %4 = vector.multi_reduction <add>, %3, %cst_1 [1] : vector<192x256xf32> to vector<192xf32>
    %5 = vector.shape_cast %4 : vector<192xf32> to vector<192x1xf32>
    %cst_2 = arith.constant 3.906250e-03 : f32
    %6 = vector.broadcast %cst_2 : f32 to vector<192x1xf32>
    %7 = arith.mulf %2, %6 : vector<192x1xf32>
    %cst_3 = arith.constant 3.906250e-03 : f32
    %8 = vector.broadcast %cst_3 : f32 to vector<192x1xf32>
    %9 = arith.mulf %5, %8 : vector<192x1xf32>
    %10 = arith.mulf %7, %7 : vector<192x1xf32>
    %11 = arith.subf %9, %10 : vector<192x1xf32>
    %cst_4 = arith.constant 0.000000e+00 : f32
    %12 = vector.broadcast %cst_4 : f32 to vector<192x1xf32>
    %13 = arith.maximumf %11, %12 : vector<192x1xf32>
    %cst_5 = arith.constant 9.99999996E-13 : f32
    %14 = vector.broadcast %cst_5 : f32 to vector<192x1xf32>
    %15 = arith.addf %13, %14 : vector<192x1xf32>
    %16 = math.rsqrt %15 : vector<192x1xf32>
    %17 = vector.broadcast %7 : vector<192x1xf32> to vector<192x256xf32>
    %18 = arith.subf %0, %17 : vector<192x256xf32>
    %19 = vector.broadcast %16 : vector<192x1xf32> to vector<192x256xf32>
    %20 = arith.mulf %18, %19 : vector<192x256xf32>
    %21 = arith.truncf %20 : vector<192x256xf32> to vector<192x256xbf16>
    %22 = arith.extf %21 : vector<192x256xbf16> to vector<192x256xf32>
    %23 = arith.subf %20, %22 : vector<192x256xf32>
    %24 = arith.truncf %23 : vector<192x256xf32> to vector<192x256xbf16>
    %c0_6 = arith.constant 0 : index
    %c0_7 = arith.constant 0 : index
    %25 = vector.load %arg2[%c0_6, %c0_7] : memref<256x256xbf16, #tpu.memory_space<vmem>>, vector<256x256xbf16>
    %c0_8 = arith.constant 0 : index
    %c0_9 = arith.constant 0 : index
    %26 = vector.load %arg3[%c0_8, %c0_9] : memref<256x256xbf16, #tpu.memory_space<vmem>>, vector<256x256xbf16>
    %cst_10 = arith.constant dense<0.000000e+00> : vector<192x256xf32>
    %27 = tpu.matmul %21, %25, %cst_10 {dimension_numbers = #tpu.dot_dimension_numbers<[1], [0], [0], [1], [0, 0, 1, 1], [], []>} : vector<192x256xbf16>, vector<256x256xbf16>, vector<192x256xf32> -> vector<192x256xf32>
    %cst_11 = arith.constant dense<0.000000e+00> : vector<192x256xf32>
    %28 = tpu.matmul %24, %25, %cst_11 {dimension_numbers = #tpu.dot_dimension_numbers<[1], [0], [0], [1], [0, 0, 1, 1], [], []>} : vector<192x256xbf16>, vector<256x256xbf16>, vector<192x256xf32> -> vector<192x256xf32>
    %29 = arith.addf %27, %28 : vector<192x256xf32>
    %cst_12 = arith.constant dense<0.000000e+00> : vector<192x256xf32>
    %30 = tpu.matmul %21, %26, %cst_12 {dimension_numbers = #tpu.dot_dimension_numbers<[1], [0], [0], [1], [0, 0, 1, 1], [], []>} : vector<192x256xbf16>, vector<256x256xbf16>, vector<192x256xf32> -> vector<192x256xf32>
    %31 = arith.addf %29, %30 : vector<192x256xf32>
    %c0_13 = arith.constant 0 : index
    %c0_14 = arith.constant 0 : index
    %32 = vector.load %arg4[%c0_13, %c0_14] : memref<1x256xf32, #tpu.memory_space<vmem>>, vector<1x256xf32>
    %33 = vector.broadcast %32 : vector<1x256xf32> to vector<192x256xf32>
    %34 = arith.addf %31, %33 : vector<192x256xf32>
    %c0_15 = arith.constant 0 : index
    %c0_16 = arith.constant 0 : index
    %35 = vector.load %arg5[%c0_15, %c0_16] : memref<192x256xf32, #tpu.memory_space<vmem>>, vector<192x256xf32>
    tpu.vector_store %arg5[%c0_15, %c0_16], %34 {strides = array<i32>} : memref<192x256xf32, #tpu.memory_space<vmem>>, vector<192x256xf32>,
    return
  }
  func.func @transform_0(%arg0: i32) -> (i32, i32) {
    %c0_i32 = arith.constant 0 : i32
    %c0_i32_0 = arith.constant 0 : i32
    return %arg0, %c0_i32 : i32, i32
  }
  func.func @transform_1(%arg0: i32) -> (i32, i32) {
    %c0_i32 = arith.constant 0 : i32
    %c0_i32_0 = arith.constant 0 : i32
    %c0_i32_1 = arith.constant 0 : i32
    return %c0_i32, %c0_i32_0 : i32, i32
  }
  func.func @transform_2(%arg0: i32) -> (i32, i32) {
    %c0_i32 = arith.constant 0 : i32
    %c0_i32_0 = arith.constant 0 : i32
    %c0_i32_1 = arith.constant 0 : i32
    return %c0_i32, %c0_i32_0 : i32, i32
  }
  func.func @transform_3(%arg0: i32) -> (i32, i32) {
    %c0_i32 = arith.constant 0 : i32
    %c0_i32_0 = arith.constant 0 : i32
    %c0_i32_1 = arith.constant 0 : i32
    return %c0_i32, %c0_i32_0 : i32, i32
  }
  func.func @transform_4(%arg0: i32) -> (i32, i32) {
    %c0_i32 = arith.constant 0 : i32
    %c0_i32_0 = arith.constant 0 : i32
    return %arg0, %c0_i32 : i32, i32
  }
}

</mosaic_0001>

<llo_original>
// kernel: tpu_custom_call.1
$region0: #{tpu_custom_call.1}
  #allocation0 [shape = 'u32[]', space=smem, size = 0x4, offset = 0x4, fixed_abs, tag = 'smem constant byte address 0x4 - core index']
  #allocation1 [shape = 'u32[144,128]{1,0:T(1,128)}', space=vmem, size = 0x12000, scoped, tag = 'internal scratch']
  %s0 = inlined_call_operand.hbm [shape: f32[384,256], index: 0, kind: input, shape index: {}]
  %s1 = inlined_call_operand.hbm [shape: bf16[256,256], index: 1, kind: input, shape index: {}]
  %s2 = inlined_call_operand.hbm [shape: bf16[256,256], index: 2, kind: input, shape index: {}]
  %s3 = inlined_call_operand.vmem [shape: f32[1,256], index: 3, kind: input, shape index: {}]
  %s4 = inlined_call_operand.hbm [shape: f32[384,256], index: 4, kind: output, shape index: {}]
  %s5 = sld [smem:[#allocation0]]
  $region61: #{tpu_custom_call.1} parent=0
    _
  %s7 = ssub.s32 1, %s5
  %s8 = scalar_select 0, %s7, %s5
  $region1: #{tpu_custom_call.1} parent=0
    #allocation2 [shape = 'u8[393216]{0}', space=vmem, size = 0x60000, scoped, tag = 'input window, operand 0']
    #allocation3 [shape = 's32[2]{0}', space=sflag, size = 0x8, scoped, tag = 'scoped memory for tpu_custom_call.1']
    #allocation4 [shape = 's32[2]{0}', space=sflag, size = 0x8, scoped, tag = 'scoped memory for tpu_custom_call.1']
    #allocation5 [shape = 'u8[131072]{0}', space=vmem, size = 0x20000, scoped, tag = 'input window, operand 1, single buffered']
    #allocation6 [shape = 's32[1]{0}', space=sflag, size = 0x4, scoped, tag = 'scoped memory for tpu_custom_call.1']
    #allocation7 [shape = 'u8[131072]{0}', space=vmem, size = 0x20000, scoped, tag = 'input window, operand 2, single buffered']
    #allocation8 [shape = 'u8[393216]{0}', space=vmem, size = 0x60000, scoped, tag = 'output window, operand 0']
    %9 = vsyncpa [#allocation3], 0
    %s10 = scalar_lea.sflag [#allocation3], 1
    %11 = vsyncpa %s10, 0
    %12 = vsyncpa [#allocation6], 0
    %13 = vsyncpa [#allocation4], 0
    %s14 = scalar_lea.sflag [#allocation4], 1
    %15 = vsyncpa %s14, 0
    loop: start=0, step=1, limit=4
    $region2: #{tpu_custom_call.1} parent=1 // loop_pre_header
      _
    $region3: #{tpu_custom_call.1} parent=1 // loop_header
      %s17 = sphi 0, %s21
      %p18 = scmp.ge.s32.totalorder %s17, 4
      %s27 = sphi 0, %s29
      %s30 = sphi 0, %s27
      %s31 = sphi 0, %s30
      %s47 = sphi 0, %s31
      %s51 = sphi 0, %s51
      %s53 = sphi 0, %s51
      %s54 = sphi 0, %s53
      %s68 = sphi 0, %s54
      %s72 = sphi 0, %s72
      %s74 = sphi 0, %s72
      %s75 = sphi 0, %s74
      %s89 = sphi 0, %s75
      %s93 = sphi 0, %s93
      %s95 = sphi 0, %s93
      %s96 = sphi 0, %s95
      %s110 = sphi 0, %s96
      %s116 = sphi 0, %s118
      %s119 = sphi 0, %s116
      %s120 = sphi 0, %s119
      %s136 = sphi 0, %s120
    $region4: #{tpu_custom_call.1} parent=1 // loop_header_branch
      %20 = sbr.rel (%p18) target = $region8
    $region5: #{tpu_custom_call.1} parent=1 // loop_body
      %s22 = ssub.s32 %s17, 1
      %s23 = ssub.s32 %s17, 2
      %s24 = sadd.s32 %s17, 1
      %s25 = ssub.s32 %s17, %s24
      %p26 = scmp.eq.s32.totalorder %s25, 0
      %s28 = sadd.s32 %s27, 1
      %s29 = scalar_select %p26, %s27, %s28
      %p32 = pneg %p26
      %p33 = scmp.eq.s32.totalorder %s17, 1
      %p34 = por %p32, %p33
      %p35 = scmp.ne.s32.totalorder %s27, %s30
      %p36 = scmp.eq.s32.totalorder %s17, 0
      %p37 = por %p35, %p36
      %p38 = scmp.ne.s32.totalorder %s27, %s30
      %p39 = scmp.eq.s32.totalorder %s22, 1
      %p40 = por %p38, %p39
      %p41 = scmp.ne.s32.totalorder %s30, %s31
      %p42 = scmp.eq.s32.totalorder %s22, 0
      %p43 = por %p41, %p42
      %p44 = scmp.ne.s32.totalorder %s30, %s31
      %p45 = scmp.eq.s32.totalorder %s23, 1
      %p46 = por %p44, %p45
      %p48 = scmp.ne.s32.totalorder %s31, %s47
      %p49 = scmp.eq.s32.totalorder %s23, 0
      %p50 = por %p48, %p49
      %s52 = sadd.s32 %s51, 1
      %p55 = scmp.eq.s32.totalorder %s17, 1
      %p56 = scmp.ne.s32.totalorder %s51, %s53
      %p57 = scmp.eq.s32.totalorder %s17, 0
      %p58 = por %p56, %p57
      %p59 = scmp.ne.s32.totalorder %s51, %s53
      %p60 = scmp.eq.s32.totalorder %s22, 1
      %p61 = por %p59, %p60
      %p62 = scmp.ne.s32.totalorder %s53, %s54
      %p63 = scmp.eq.s32.totalorder %s22, 0
      %p64 = por %p62, %p63
      %p65 = scmp.ne.s32.totalorder %s53, %s54
      %p66 = scmp.eq.s32.totalorder %s23, 1
      %p67 = por %p65, %p66
      %p69 = scmp.ne.s32.totalorder %s54, %s68
      %p70 = scmp.eq.s32.totalorder %s23, 0
      %p71 = por %p69, %p70
      %s73 = sadd.s32 %s72, 1
      %p76 = scmp.eq.s32.totalorder %s17, 1
      %p77 = scmp.ne.s32.totalorder %s72, %s74
      %p78 = scmp.eq.s32.totalorder %s17, 0
      %p79 = por %p77, %p78
      %p80 = scmp.ne.s32.totalorder %s72, %s74
      %p81 = scmp.eq.s32.totalorder %s22, 1
      %p82 = por %p80, %p81
      %p83 = scmp.ne.s32.totalorder %s74, %s75
      %p84 = scmp.eq.s32.totalorder %s22, 0
      %p85 = por %p83, %p84
      %p86 = scmp.ne.s32.totalorder %s74, %s75
      %p87 = scmp.eq.s32.totalorder %s23, 1
      %p88 = por %p86, %p87
      %p90 = scmp.ne.s32.totalorder %s75, %s89
      %p91 = scmp.eq.s32.totalorder %s23, 0
      %p92 = por %p90, %p91
      %s94 = sadd.s32 %s93, 1
      %p97 = scmp.eq.s32.totalorder %s17, 1
      %p98 = scmp.ne.s32.totalorder %s93, %s95
      %p99 = scmp.eq.s32.totalorder %s17, 0
      %p100 = por %p98, %p99
      %p101 = scmp.ne.s32.totalorder %s93, %s95
      %p102 = scmp.eq.s32.totalorder %s22, 1
      %p103 = por %p101, %p102
      %p104 = scmp.ne.s32.totalorder %s95, %s96
      %p105 = scmp.eq.s32.totalorder %s22, 0
      %p106 = por %p104, %p105
      %p107 = scmp.ne.s32.totalorder %s95, %s96
      %p108 = scmp.eq.s32.totalorder %s23, 1
      %p109 = por %p107, %p108
      %p111 = scmp.ne.s32.totalorder %s96, %s110
      %p112 = scmp.eq.s32.totalorder %s23, 0
      %p113 = por %p111, %p112
      %s114 = ssub.s32 %s17, %s24
      %p115 = scmp.eq.s32.totalorder %s114, 0
      %s117 = sadd.s32 %s116, 1
      %s118 = scalar_select %p115, %s116, %s117
      %p121 = pneg %p115
      %p122 = scmp.eq.s32.totalorder %s17, 1
      %p123 = por %p121, %p122
      %p124 = scmp.ne.s32.totalorder %s116, %s119
      %p125 = scmp.eq.s32.totalorder %s17, 0
      %p126 = por %p124, %p125
      %p127 = scmp.ne.s32.totalorder %s116, %s119
      %p128 = scmp.eq.s32.totalorder %s22, 1
      %p129 = por %p127, %p128
      %p130 = scmp.ne.s32.totalorder %s119, %s120
      %p131 = scmp.eq.s32.totalorder %s22, 0
      %p132 = por %p130, %p131
      %p133 = scmp.ne.s32.totalorder %s119, %s120
      %p134 = scmp.eq.s32.totalorder %s23, 1
      %p135 = por %p133, %p134
      %p137 = scmp.ne.s32.totalorder %s120, %s136
      %p138 = scmp.eq.s32.totalorder %s23, 0
      %p139 = por %p137, %p138
      %p140 = scmp.le.s32.totalorder 1, %s17
      %p141 = scmp.lt.s32.totalorder %s17, 3
      %p142 = pnand %p140, %p141
      %p143 = pneg %p142
      // Predicated region
      $region9: #{tpu_custom_call.1} parent=5 // pred_check
        _
      $region10: #{tpu_custom_call.1} parent=5 // pred_check_branch
        %145 = sbr.rel (%p142) target = $region12
      $region11: #{tpu_custom_call.1} parent=5 // pred_region
        %s146 = ssub.s32 %s17, 1
        // Predicated region
        $region13: #{tpu_custom_call.1} parent=11 // pred_check
          %p147 = pneg %p64
        $region14: #{tpu_custom_call.1} parent=11 // pred_check_branch
          %149 = sbr.rel (%p147) target = $region16
        $region15: #{tpu_custom_call.1} parent=11 // pred_region
          %s151 = ssub.s32 4096, 4096
          %152 = vsyncadd [#allocation6], %s151
          %s153 = sshll.u32 [#allocation5], 4
          %s154 = int_to_ptr.vmem [resolvable:$true] %s153
          %159 = dma.hbm_to_vmem [thread:$0]  %s1, 4096, %s154, [#allocation6], 128, 128, 8
        $region16: #{tpu_custom_call.1} parent=11 // pred_fallthru
          _
        // Predicated region
        $region17: #{tpu_custom_call.1} parent=11 // pred_check
          %p160 = pneg %p85
        $region18: #{tpu_custom_call.1} parent=11 // pred_check_branch
          %162 = sbr.rel (%p160) target = $region20
        $region19: #{tpu_custom_call.1} parent=11 // pred_region
          %s164 = ssub.s32 4096, 4096
          %165 = vsyncadd [#allocation6], %s164
          %s166 = sshll.u32 [#allocation7], 4
          %s167 = int_to_ptr.vmem [resolvable:$true] %s166
          %172 = dma.hbm_to_vmem [thread:$0]  %s2, 4096, %s167, [#allocation6], 128, 128, 8
        $region20: #{tpu_custom_call.1} parent=11 // pred_fallthru
          _
        // Predicated region
        $region21: #{tpu_custom_call.1} parent=11 // pred_check
          %p173 = pneg %p106
        $region22: #{tpu_custom_call.1} parent=11 // pred_check_branch
          %175 = sbr.rel (%p173) target = $region24
        $region23: #{tpu_custom_call.1} parent=11 // pred_region
          _
        $region24: #{tpu_custom_call.1} parent=11 // pred_fallthru
          _
      $region12: #{tpu_custom_call.1} parent=5 // pred_fallthru
        _
      %p176 = scmp.lt.s32.totalorder %s17, 2
      // Predicated region
      $region25: #{tpu_custom_call.1} parent=5 // pred_check
        %p177 = pneg %p176
      $region26: #{tpu_custom_call.1} parent=5 // pred_check_branch
        %179 = sbr.rel (%p177) target = $region28
      $region27: #{tpu_custom_call.1} parent=5 // pred_region
        // Predicated region
        $region29: #{tpu_custom_call.1} parent=27 // pred_check
          %p180 = pneg %p37
        $region30: #{tpu_custom_call.1} parent=27 // pred_check_branch
          %182 = sbr.rel (%p180) target = $region32
        $region31: #{tpu_custom_call.1} parent=27 // pred_region
          %s183 = sand.u32 %s27, 1
          %s184 = scalar_lea.sflag [#allocation3], %s183
          %s185 = sand.u32 %s27, 1
          %s186 = smul.addr %s185, 384
          %s187 = scalar_lea.vmem [#allocation2], %s186
          %s188 = smul.u32 24, %s17
          %s190 = ssub.s32 6144, 6144
          %191 = vsyncadd %s184, %s190
          %s192 = smul.addr %s188, 2
          %s193 = smul.addr %s192, 128
          %s194 = scalar_lea.hbm %s0, %s193
          %s195 = sshll.u32 %s187, 4
          %s196 = int_to_ptr.vmem [resolvable:$true] %s195
          %201 = dma.hbm_to_vmem [thread:$0]  %s194, 6144, %s196, %s184, 256, 256, 16
        $region32: #{tpu_custom_call.1} parent=27 // pred_fallthru
          _
      $region28: #{tpu_custom_call.1} parent=5 // pred_fallthru
        _
      %p202 = scmp.le.s32.totalorder 1, %s17
      %p203 = scmp.lt.s32.totalorder %s17, 3
      %p204 = pnand %p202, %p203
      %p205 = pneg %p204
      // Predicated region
      $region33: #{tpu_custom_call.1} parent=5 // pred_check
        _
      $region34: #{tpu_custom_call.1} parent=5 // pred_check_branch
        %207 = sbr.rel (%p204) target = $region36
      $region35: #{tpu_custom_call.1} parent=5 // pred_region
        %s208 = ssub.s32 %s17, 1
        %s209 = sand.u32 %s30, 1
        %s210 = scalar_lea.sflag [#allocation3], %s209
        %s211 = sand.u32 %s30, 1
        %s212 = smul.addr %s211, 384
        %s213 = scalar_lea.vmem [#allocation2], %s212
        // Predicated region
        $region37: #{tpu_custom_call.1} parent=35 // pred_check
          %p214 = pneg %p43
        $region38: #{tpu_custom_call.1} parent=35 // pred_check_branch
          %216 = sbr.rel (%p214) target = $region40
        $region39: #{tpu_custom_call.1} parent=35 // pred_region
          %217 = dma.done %s210, 6144
        $region40: #{tpu_custom_call.1} parent=35 // pred_fallthru
          _
        // Predicated region
        $region41: #{tpu_custom_call.1} parent=35 // pred_check
          %p218 = pneg %p64
        $region42: #{tpu_custom_call.1} parent=35 // pred_check_branch
          %220 = sbr.rel (%p218) target = $region44
        $region43: #{tpu_custom_call.1} parent=35 // pred_region
          %221 = dma.done [#allocation6], 4096
        $region44: #{tpu_custom_call.1} parent=35 // pred_fallthru
          _
        // Predicated region
        $region45: #{tpu_custom_call.1} parent=35 // pred_check
          %p222 = pneg %p85
        $region46: #{tpu_custom_call.1} parent=35 // pred_check_branch
          %224 = sbr.rel (%p222) target = $region48
        $region47: #{tpu_custom_call.1} parent=35 // pred_region
          %225 = dma.done [#allocation6], 4096
        $region48: #{tpu_custom_call.1} parent=35 // pred_fallthru
          _
        %s226 = sand.u32 %s30, 1
        %s227 = scalar_lea.sflag [#allocation3], %s226
        %s228 = sand.u32 %s30, 1
        %s229 = smul.addr %s228, 384
        %s230 = scalar_lea.vmem [#allocation2], %s229
        %p231 = pneg %p43
        %p232 = pneg %p40
        %p233 = pneg %p64
        %p234 = pneg %p61
        %p235 = pneg %p85
        %p236 = pneg %p82
        %p237 = pneg %p106
        %p238 = pneg %p103
        %p239 = pneg %p132
        %p240 = pneg %p129
        %s241 = sand.u32 %s119, 1
        %s242 = scalar_lea.sflag [#allocation4], %s241
        %s243 = sand.u32 %s119, 1
        %s244 = smul.addr %s243, 384
        %s245 = scalar_lea.vmem [#allocation8], %s244
        %s246 = smul.u32 24, %s22
        %s247 = smul.u32 24, %s22
        %v248 = vld [vmem:[%s213] sm:$0xff]
        %v249 = vld [vmem:[%s213 + $0x8] sm:$0xff]
        %v250 = vld [vmem:[%s213 + $0x10] sm:$0xff]
        %v251 = vld [vmem:[%s213 + $0x18] sm:$0xff]
        %v252 = vld [vmem:[%s213 + $0x20] sm:$0xff]
        %v253 = vld [vmem:[%s213 + $0x28] sm:$0xff]
        %v254 = vld [vmem:[%s213 + $0x30] sm:$0xff]
        %v255 = vld [vmem:[%s213 + $0x38] sm:$0xff]
        %v256 = vld [vmem:[%s213 + $0x40] sm:$0xff]
        %v257 = vld [vmem:[%s213 + $0x48] sm:$0xff]
        %v258 = vld [vmem:[%s213 + $0x50] sm:$0xff]
        %v259 = vld [vmem:[%s213 + $0x58] sm:$0xff]
        %v260 = vld [vmem:[%s213 + $0x60] sm:$0xff]
        %v261 = vld [vmem:[%s213 + $0x68] sm:$0xff]
        %v262 = vld [vmem:[%s213 + $0x70] sm:$0xff]
        %v263 = vld [vmem:[%s213 + $0x78] sm:$0xff]
        %v264 = vld [vmem:[%s213 + $0x80] sm:$0xff]
        %v265 = vld [vmem:[%s213 + $0x88] sm:$0xff]
        %v266 = vld [vmem:[%s213 + $0x90] sm:$0xff]
        %v267 = vld [vmem:[%s213 + $0x98] sm:$0xff]
        %v268 = vld [vmem:[%s213 + $0xa0] sm:$0xff]
        %v269 = vld [vmem:[%s213 + $0xa8] sm:$0xff]
        %v270 = vld [vmem:[%s213 + $0xb0] sm:$0xff]
        %v271 = vld [vmem:[%s213 + $0xb8] sm:$0xff]
        %v272 = vld [vmem:[%s213 + $0xc0] sm:$0xff]
        %v273 = vld [vmem:[%s213 + $0xc8] sm:$0xff]
        %v274 = vld [vmem:[%s213 + $0xd0] sm:$0xff]
        %v275 = vld [vmem:[%s213 + $0xd8] sm:$0xff]
        %v276 = vld [vmem:[%s213 + $0xe0] sm:$0xff]
        %v277 = vld [vmem:[%s213 + $0xe8] sm:$0xff]
        %v278 = vld [vmem:[%s213 + $0xf0] sm:$0xff]
        %v279 = vld [vmem:[%s213 + $0xf8] sm:$0xff]
        %v280 = vld [vmem:[%s213 + $0x100] sm:$0xff]
        %v281 = vld [vmem:[%s213 + $0x108] sm:$0xff]
        %v282 = vld [vmem:[%s213 + $0x110] sm:$0xff]
        %v283 = vld [vmem:[%s213 + $0x118] sm:$0xff]
        %v284 = vld [vmem:[%s213 + $0x120] sm:$0xff]
        %v285 = vld [vmem:[%s213 + $0x128] sm:$0xff]
        %v286 = vld [vmem:[%s213 + $0x130] sm:$0xff]
        %v287 = vld [vmem:[%s213 + $0x138] sm:$0xff]
        %v288 = vld [vmem:[%s213 + $0x140] sm:$0xff]
        %v289 = vld [vmem:[%s213 + $0x148] sm:$0xff]
        %v290 = vld [vmem:[%s213 + $0x150] sm:$0xff]
        %v291 = vld [vmem:[%s213 + $0x158] sm:$0xff]
        %v292 = vld [vmem:[%s213 + $0x160] sm:$0xff]
        %v293 = vld [vmem:[%s213 + $0x168] sm:$0xff]
        %v294 = vld [vmem:[%s213 + $0x170] sm:$0xff]
        %v295 = vld [vmem:[%s213 + $0x178] sm:$0xff]
        %v296 = vadd.f32 %v248, %v249
        %297 = vadd.xlane.f32.xlu0 %v296
        %v298 = vpop.xlane.xlu0 %297
        %v299 = vadd.f32 %v250, %v251
        %300 = vadd.xlane.f32.xlu0 %v299
        %v301 = vpop.xlane.xlu0 %300
        %v302 = vadd.f32 %v252, %v253
        %303 = vadd.xlane.f32.xlu0 %v302
        %v304 = vpop.xlane.xlu0 %303
        %v305 = vadd.f32 %v254, %v255
        %306 = vadd.xlane.f32.xlu0 %v305
        %v307 = vpop.xlane.xlu0 %306
        %v308 = vadd.f32 %v256, %v257
        %309 = vadd.xlane.f32.xlu0 %v308
        %v310 = vpop.xlane.xlu0 %309
        %v311 = vadd.f32 %v258, %v259
        %312 = vadd.xlane.f32.xlu0 %v311
        %v313 = vpop.xlane.xlu0 %312
        %v314 = vadd.f32 %v260, %v261
        %315 = vadd.xlane.f32.xlu0 %v314
        %v316 = vpop.xlane.xlu0 %315
        %v317 = vadd.f32 %v262, %v263
        %318 = vadd.xlane.f32.xlu0 %v317
        %v319 = vpop.xlane.xlu0 %318
        %v320 = vadd.f32 %v264, %v265
        %321 = vadd.xlane.f32.xlu0 %v320
        %v322 = vpop.xlane.xlu0 %321
        %v323 = vadd.f32 %v266, %v267
        %324 = vadd.xlane.f32.xlu0 %v323
        %v325 = vpop.xlane.xlu0 %324
        %v326 = vadd.f32 %v268, %v269
        %327 = vadd.xlane.f32.xlu0 %v326
        %v328 = vpop.xlane.xlu0 %327
        %v329 = vadd.f32 %v270, %v271
        %330 = vadd.xlane.f32.xlu0 %v329
        %v331 = vpop.xlane.xlu0 %330
        %v332 = vadd.f32 %v272, %v273
        %333 = vadd.xlane.f32.xlu0 %v332
        %v334 = vpop.xlane.xlu0 %333
        %v335 = vadd.f32 %v274, %v275
        %336 = vadd.xlane.f32.xlu0 %v335
        %v337 = vpop.xlane.xlu0 %336
        %v338 = vadd.f32 %v276, %v277
        %339 = vadd.xlane.f32.xlu0 %v338
        %v340 = vpop.xlane.xlu0 %339
        %v341 = vadd.f32 %v278, %v279
        %342 = vadd.xlane.f32.xlu0 %v341
        %v343 = vpop.xlane.xlu0 %342
        %v344 = vadd.f32 %v280, %v281
        %345 = vadd.xlane.f32.xlu0 %v344
        %v346 = vpop.xlane.xlu0 %345
        %v347 = vadd.f32 %v282, %v283
        %348 = vadd.xlane.f32.xlu0 %v347
        %v349 = vpop.xlane.xlu0 %348
        %v350 = vadd.f32 %v284, %v285
        %351 = vadd.xlane.f32.xlu0 %v350
        %v352 = vpop.xlane.xlu0 %351
        %v353 = vadd.f32 %v286, %v287
        %354 = vadd.xlane.f32.xlu0 %v353
        %v355 = vpop.xlane.xlu0 %354
        %v356 = vadd.f32 %v288, %v289
        %357 = vadd.xlane.f32.xlu0 %v356
        %v358 = vpop.xlane.xlu0 %357
        %v359 = vadd.f32 %v290, %v291
        %360 = vadd.xlane.f32.xlu0 %v359
        %v361 = vpop.xlane.xlu0 %360
        %v362 = vadd.f32 %v292, %v293
        %363 = vadd.xlane.f32.xlu0 %v362
        %v364 = vpop.xlane.xlu0 %363
        %v365 = vadd.f32 %v294, %v295
        %366 = vadd.xlane.f32.xlu0 %v365
        %v367 = vpop.xlane.xlu0 %366
        %v368 = vmul.f32 %v248, %v248
        %v369 = vmul.f32 %v249, %v249
        %v370 = vmul.f32 %v250, %v250
        %v371 = vmul.f32 %v251, %v251
        %v372 = vmul.f32 %v252, %v252
        %v373 = vmul.f32 %v253, %v253
        %v374 = vmul.f32 %v254, %v254
        %v375 = vmul.f32 %v255, %v255
        %v376 = vmul.f32 %v256, %v256
        %v377 = vmul.f32 %v257, %v257
        %v378 = vmul.f32 %v258, %v258
        %v379 = vmul.f32 %v259, %v259
        %v380 = vmul.f32 %v260, %v260
        %v381 = vmul.f32 %v261, %v261
        %v382 = vmul.f32 %v262, %v262
        %v383 = vmul.f32 %v263, %v263
        %v384 = vmul.f32 %v264, %v264
        %v385 = vmul.f32 %v265, %v265
        %v386 = vmul.f32 %v266, %v266
        %v387 = vmul.f32 %v267, %v267
        %v388 = vmul.f32 %v268, %v268
        %v389 = vmul.f32 %v269, %v269
        %v390 = vmul.f32 %v270, %v270
        %v391 = vmul.f32 %v271, %v271
        %v392 = vmul.f32 %v272, %v272
        %v393 = vmul.f32 %v273, %v273
        %v394 = vmul.f32 %v274, %v274
        %v395 = vmul.f32 %v275, %v275
        %v396 = vmul.f32 %v276, %v276
        %v397 = vmul.f32 %v277, %v277
        %v398 = vmul.f32 %v278, %v278
        %v399 = vmul.f32 %v279, %v279
        %v400 = vmul.f32 %v280, %v280
        %v401 = vmul.f32 %v281, %v281
        %v402 = vmul.f32 %v282, %v282
        %v403 = vmul.f32 %v283, %v283
        %v404 = vmul.f32 %v284, %v284
        %v405 = vmul.f32 %v285, %v285
        %v406 = vmul.f32 %v286, %v286
        %v407 = vmul.f32 %v287, %v287
        %v408 = vmul.f32 %v288, %v288
        %v409 = vmul.f32 %v289, %v289
        %v410 = vmul.f32 %v290, %v290
        %v411 = vmul.f32 %v291, %v291
        %v412 = vmul.f32 %v292, %v292
        %v413 = vmul.f32 %v293, %v293
        %v414 = vmul.f32 %v294, %v294
        %v415 = vmul.f32 %v295, %v295
        %v416 = vadd.f32 %v368, %v369
        %417 = vadd.xlane.f32.xlu0 %v416
        %v418 = vpop.xlane.xlu0 %417
        %v419 = vadd.f32 %v370, %v371
        %420 = vadd.xlane.f32.xlu0 %v419
        %v421 = vpop.xlane.xlu0 %420
        %v422 = vadd.f32 %v372, %v373
        %423 = vadd.xlane.f32.xlu0 %v422
        %v424 = vpop.xlane.xlu0 %423
        %v425 = vadd.f32 %v374, %v375
        %426 = vadd.xlane.f32.xlu0 %v425
        %v427 = vpop.xlane.xlu0 %426
        %v428 = vadd.f32 %v376, %v377
        %429 = vadd.xlane.f32.xlu0 %v428
        %v430 = vpop.xlane.xlu0 %429
        %v431 = vadd.f32 %v378, %v379
        %432 = vadd.xlane.f32.xlu0 %v431
        %v433 = vpop.xlane.xlu0 %432
        %v434 = vadd.f32 %v380, %v381
        %435 = vadd.xlane.f32.xlu0 %v434
        %v436 = vpop.xlane.xlu0 %435
        %v437 = vadd.f32 %v382, %v383
        %438 = vadd.xlane.f32.xlu0 %v437
        %v439 = vpop.xlane.xlu0 %438
        %v440 = vadd.f32 %v384, %v385
        %441 = vadd.xlane.f32.xlu0 %v440
        %v442 = vpop.xlane.xlu0 %441
        %v443 = vadd.f32 %v386, %v387
        %444 = vadd.xlane.f32.xlu0 %v443
        %v445 = vpop.xlane.xlu0 %444
        %v446 = vadd.f32 %v388, %v389
        %447 = vadd.xlane.f32.xlu0 %v446
        %v448 = vpop.xlane.xlu0 %447
        %v449 = vadd.f32 %v390, %v391
        %450 = vadd.xlane.f32.xlu0 %v449
        %v451 = vpop.xlane.xlu0 %450
        %v452 = vadd.f32 %v392, %v393
        %453 = vadd.xlane.f32.xlu0 %v452
        %v454 = vpop.xlane.xlu0 %453
        %v455 = vadd.f32 %v394, %v395
        %456 = vadd.xlane.f32.xlu0 %v455
        %v457 = vpop.xlane.xlu0 %456
        %v458 = vadd.f32 %v396, %v397
        %459 = vadd.xlane.f32.xlu0 %v458
        %v460 = vpop.xlane.xlu0 %459
        %v461 = vadd.f32 %v398, %v399
        %462 = vadd.xlane.f32.xlu0 %v461
        %v463 = vpop.xlane.xlu0 %462
        %v464 = vadd.f32 %v400, %v401
        %465 = vadd.xlane.f32.xlu0 %v464
        %v466 = vpop.xlane.xlu0 %465
        %v467 = vadd.f32 %v402, %v403
        %468 = vadd.xlane.f32.xlu0 %v467
        %v469 = vpop.xlane.xlu0 %468
        %v470 = vadd.f32 %v404, %v405
        %471 = vadd.xlane.f32.xlu0 %v470
        %v472 = vpop.xlane.xlu0 %471
        %v473 = vadd.f32 %v406, %v407
        %474 = vadd.xlane.f32.xlu0 %v473
        %v475 = vpop.xlane.xlu0 %474
        %v476 = vadd.f32 %v408, %v409
        %477 = vadd.xlane.f32.xlu0 %v476
        %v478 = vpop.xlane.xlu0 %477
        %v479 = vadd.f32 %v410, %v411
        %480 = vadd.xlane.f32.xlu0 %v479
        %v481 = vpop.xlane.xlu0 %480
        %v482 = vadd.f32 %v412, %v413
        %483 = vadd.xlane.f32.xlu0 %v482
        %v484 = vpop.xlane.xlu0 %483
        %v485 = vadd.f32 %v414, %v415
        %486 = vadd.xlane.f32.xlu0 %v485
        %v487 = vpop.xlane.xlu0 %486
        %v488 = vmul.f32 %v298, 0.00390625
        %v489 = vmul.f32 %v301, 0.00390625
        %v490 = vmul.f32 %v304, 0.00390625
        %v491 = vmul.f32 %v307, 0.00390625
        %v492 = vmul.f32 %v310, 0.00390625
        %v493 = vmul.f32 %v313, 0.00390625
        %v494 = vmul.f32 %v316, 0.00390625
        %v495 = vmul.f32 %v319, 0.00390625
        %v496 = vmul.f32 %v322, 0.00390625
        %v497 = vmul.f32 %v325, 0.00390625
        %v498 = vmul.f32 %v328, 0.00390625
        %v499 = vmul.f32 %v331, 0.00390625
        %v500 = vmul.f32 %v334, 0.00390625
        %v501 = vmul.f32 %v337, 0.00390625
        %v502 = vmul.f32 %v340, 0.00390625
        %v503 = vmul.f32 %v343, 0.00390625
        %v504 = vmul.f32 %v346, 0.00390625
        %v505 = vmul.f32 %v349, 0.00390625
        %v506 = vmul.f32 %v352, 0.00390625
        %v507 = vmul.f32 %v355, 0.00390625
        %v508 = vmul.f32 %v358, 0.00390625
        %v509 = vmul.f32 %v361, 0.00390625
        %v510 = vmul.f32 %v364, 0.00390625
        %v511 = vmul.f32 %v367, 0.00390625
        %v512 = vmul.f32 %v418, 0.00390625
        %v513 = vmul.f32 %v421, 0.00390625
        %v514 = vmul.f32 %v424, 0.00390625
        %v515 = vmul.f32 %v427, 0.00390625
        %v516 = vmul.f32 %v430, 0.00390625
        %v517 = vmul.f32 %v433, 0.00390625
        %v518 = vmul.f32 %v436, 0.00390625
        %v519 = vmul.f32 %v439, 0.00390625
        %v520 = vmul.f32 %v442, 0.00390625
        %v521 = vmul.f32 %v445, 0.00390625
        %v522 = vmul.f32 %v448, 0.00390625
        %v523 = vmul.f32 %v451, 0.00390625
        %v524 = vmul.f32 %v454, 0.00390625
        %v525 = vmul.f32 %v457, 0.00390625
        %v526 = vmul.f32 %v460, 0.00390625
        %v527 = vmul.f32 %v463, 0.00390625
        %v528 = vmul.f32 %v466, 0.00390625
        %v529 = vmul.f32 %v469, 0.00390625
        %v530 = vmul.f32 %v472, 0.00390625
        %v531 = vmul.f32 %v475, 0.00390625
        %v532 = vmul.f32 %v478, 0.00390625
        %v533 = vmul.f32 %v481, 0.00390625
        %v534 = vmul.f32 %v484, 0.00390625
        %v535 = vmul.f32 %v487, 0.00390625
        %v536 = vmul.f32 %v488, %v488
        %v537 = vmul.f32 %v489, %v489
        %v538 = vmul.f32 %v490, %v490
        %v539 = vmul.f32 %v491, %v491
        %v540 = vmul.f32 %v492, %v492
        %v541 = vmul.f32 %v493, %v493
        %v542 = vmul.f32 %v494, %v494
        %v543 = vmul.f32 %v495, %v495
        %v544 = vmul.f32 %v496, %v496
        %v545 = vmul.f32 %v497, %v497
        %v546 = vmul.f32 %v498, %v498
        %v547 = vmul.f32 %v499, %v499
        %v548 = vmul.f32 %v500, %v500
        %v549 = vmul.f32 %v501, %v501
        %v550 = vmul.f32 %v502, %v502
        %v551 = vmul.f32 %v503, %v503
        %v552 = vmul.f32 %v504, %v504
        %v553 = vmul.f32 %v505, %v505
        %v554 = vmul.f32 %v506, %v506
        %v555 = vmul.f32 %v507, %v507
        %v556 = vmul.f32 %v508, %v508
        %v557 = vmul.f32 %v509, %v509
        %v558 = vmul.f32 %v510, %v510
        %v559 = vmul.f32 %v511, %v511
        %v560 = vsub.f32 %v512, %v536
        %v561 = vsub.f32 %v513, %v537
        %v562 = vsub.f32 %v514, %v538
        %v563 = vsub.f32 %v515, %v539
        %v564 = vsub.f32 %v516, %v540
        %v565 = vsub.f32 %v517, %v541
        %v566 = vsub.f32 %v518, %v542
        %v567 = vsub.f32 %v519, %v543
        %v568 = vsub.f32 %v520, %v544
        %v569 = vsub.f32 %v521, %v545
        %v570 = vsub.f32 %v522, %v546
        %v571 = vsub.f32 %v523, %v547
        %v572 = vsub.f32 %v524, %v548
        %v573 = vsub.f32 %v525, %v549
        %v574 = vsub.f32 %v526, %v550
        %v575 = vsub.f32 %v527, %v551
        %v576 = vsub.f32 %v528, %v552
        %v577 = vsub.f32 %v529, %v553
        %v578 = vsub.f32 %v530, %v554
        %v579 = vsub.f32 %v531, %v555
        %v580 = vsub.f32 %v532, %v556
        %v581 = vsub.f32 %v533, %v557
        %v582 = vsub.f32 %v534, %v558
        %v583 = vsub.f32 %v535, %v559
        %v584 = vmax.f32 %v560, 0.0
        %v585 = vmax.f32 %v561, 0.0
        %v586 = vmax.f32 %v562, 0.0
        %v587 = vmax.f32 %v563, 0.0
        %v588 = vmax.f32 %v564, 0.0
        %v589 = vmax.f32 %v565, 0.0
        %v590 = vmax.f32 %v566, 0.0
        %v591 = vmax.f32 %v567, 0.0
        %v592 = vmax.f32 %v568, 0.0
        %v593 = vmax.f32 %v569, 0.0
        %v594 = vmax.f32 %v570, 0.0
        %v595 = vmax.f32 %v571, 0.0
        %v596 = vmax.f32 %v572, 0.0
        %v597 = vmax.f32 %v573, 0.0
        %v598 = vmax.f32 %v574, 0.0
        %v599 = vmax.f32 %v575, 0.0
        %v600 = vmax.f32 %v576, 0.0
        %v601 = vmax.f32 %v577, 0.0
        %v602 = vmax.f32 %v578, 0.0
        %v603 = vmax.f32 %v579, 0.0
        %v604 = vmax.f32 %v580, 0.0
        %v605 = vmax.f32 %v581, 0.0
        %v606 = vmax.f32 %v582, 0.0
        %v607 = vmax.f32 %v583, 0.0
        %v608 = vadd.f32 %v584, 1e-12
        %v609 = vadd.f32 %v585, 1e-12
        %v610 = vadd.f32 %v586, 1e-12
        %v611 = vadd.f32 %v587, 1e-12
        %v612 = vadd.f32 %v588, 1e-12
        %v613 = vadd.f32 %v589, 1e-12
        %v614 = vadd.f32 %v590, 1e-12
        %v615 = vadd.f32 %v591, 1e-12
        %v616 = vadd.f32 %v592, 1e-12
        %v617 = vadd.f32 %v593, 1e-12
        %v618 = vadd.f32 %v594, 1e-12
        %v619 = vadd.f32 %v595, 1e-12
        %v620 = vadd.f32 %v596, 1e-12
        %v621 = vadd.f32 %v597, 1e-12
        %v622 = vadd.f32 %v598, 1e-12
        %v623 = vadd.f32 %v599, 1e-12
        %v624 = vadd.f32 %v600, 1e-12
        %v625 = vadd.f32 %v601, 1e-12
        %v626 = vadd.f32 %v602, 1e-12
        %v627 = vadd.f32 %v603, 1e-12
        %v628 = vadd.f32 %v604, 1e-12
        %v629 = vadd.f32 %v605, 1e-12
        %v630 = vadd.f32 %v606, 1e-12
        %v631 = vadd.f32 %v607, 1e-12
        %v632 = vrsqrt.pop %v608
        %v633 = vrsqrt.pop %v609
        %v634 = vrsqrt.pop %v610
        %v635 = vrsqrt.pop %v611
        %v636 = vrsqrt.pop %v612
        %v637 = vrsqrt.pop %v613
        %v638 = vrsqrt.pop %v614
        %v639 = vrsqrt.pop %v615
        %v640 = vrsqrt.pop %v616
        %v641 = vrsqrt.pop %v617
        %v642 = vrsqrt.pop %v618
        %v643 = vrsqrt.pop %v619
        %v644 = vrsqrt.pop %v620
        %v645 = vrsqrt.pop %v621
        %v646 = vrsqrt.pop %v622
        %v647 = vrsqrt.pop %v623
        %v648 = vrsqrt.pop %v624
        %v649 = vrsqrt.pop %v625
        %v650 = vrsqrt.pop %v626
        %v651 = vrsqrt.pop %v627
        %v652 = vrsqrt.pop %v628
        %v653 = vrsqrt.pop %v629
        %v654 = vrsqrt.pop %v630
        %v655 = vrsqrt.pop %v631
        %v656 = vsub.f32 %v248, %v488
        %v657 = vsub.f32 %v249, %v488
        %v658 = vsub.f32 %v250, %v489
        %v659 = vsub.f32 %v251, %v489
        %v660 = vsub.f32 %v252, %v490
        %v661 = vsub.f32 %v253, %v490
        %v662 = vsub.f32 %v254, %v491
        %v663 = vsub.f32 %v255, %v491
        %v664 = vsub.f32 %v256, %v492
        %v665 = vsub.f32 %v257, %v492
        %v666 = vsub.f32 %v258, %v493
        %v667 = vsub.f32 %v259, %v493
        %v668 = vsub.f32 %v260, %v494
        %v669 = vsub.f32 %v261, %v494
        %v670 = vsub.f32 %v262, %v495
        %v671 = vsub.f32 %v263, %v495
        %v672 = vsub.f32 %v264, %v496
        %v673 = vsub.f32 %v265, %v496
        %v674 = vsub.f32 %v266, %v497
        %v675 = vsub.f32 %v267, %v497
        %v676 = vsub.f32 %v268, %v498
        %v677 = vsub.f32 %v269, %v498
        %v678 = vsub.f32 %v270, %v499
        %v679 = vsub.f32 %v271, %v499
        %v680 = vsub.f32 %v272, %v500
        %v681 = vsub.f32 %v273, %v500
        %v682 = vsub.f32 %v274, %v501
        %v683 = vsub.f32 %v275, %v501
        %v684 = vsub.f32 %v276, %v502
        %v685 = vsub.f32 %v277, %v502
        %v686 = vsub.f32 %v278, %v503
        %v687 = vsub.f32 %v279, %v503
        %v688 = vsub.f32 %v280, %v504
        %v689 = vsub.f32 %v281, %v504
        %v690 = vsub.f32 %v282, %v505
        %v691 = vsub.f32 %v283, %v505
        %v692 = vsub.f32 %v284, %v506
        %v693 = vsub.f32 %v285, %v506
        %v694 = vsub.f32 %v286, %v507
        %v695 = vsub.f32 %v287, %v507
        %v696 = vsub.f32 %v288, %v508
        %v697 = vsub.f32 %v289, %v508
        %v698 = vsub.f32 %v290, %v509
        %v699 = vsub.f32 %v291, %v509
        %v700 = vsub.f32 %v292, %v510
        %v701 = vsub.f32 %v293, %v510
        %v702 = vsub.f32 %v294, %v511
        %v703 = vsub.f32 %v295, %v511
        %v704 = vmul.f32 %v656, %v632
        %v705 = vmul.f32 %v657, %v632
        %v706 = vmul.f32 %v658, %v633
        %v707 = vmul.f32 %v659, %v633
        %v708 = vmul.f32 %v660, %v634
        %v709 = vmul.f32 %v661, %v634
        %v710 = vmul.f32 %v662, %v635
        %v711 = vmul.f32 %v663, %v635
        %v712 = vmul.f32 %v664, %v636
        %v713 = vmul.f32 %v665, %v636
        %v714 = vmul.f32 %v666, %v637
        %v715 = vmul.f32 %v667, %v637
        %v716 = vmul.f32 %v668, %v638
        %v717 = vmul.f32 %v669, %v638
        %v718 = vmul.f32 %v670, %v639
        %v719 = vmul.f32 %v671, %v639
        %v720 = vmul.f32 %v672, %v640
        %v721 = vmul.f32 %v673, %v640
        %v722 = vmul.f32 %v674, %v641
        %v723 = vmul.f32 %v675, %v641
        %v724 = vmul.f32 %v676, %v642
        %v725 = vmul.f32 %v677, %v642
        %v726 = vmul.f32 %v678, %v643
        %v727 = vmul.f32 %v679, %v643
        %v728 = vmul.f32 %v680, %v644
        %v729 = vmul.f32 %v681, %v644
        %v730 = vmul.f32 %v682, %v645
        %v731 = vmul.f32 %v683, %v645
        %v732 = vmul.f32 %v684, %v646
        %v733 = vmul.f32 %v685, %v646
        %v734 = vmul.f32 %v686, %v647
        %v735 = vmul.f32 %v687, %v647
        %v736 = vmul.f32 %v688, %v648
        %v737 = vmul.f32 %v689, %v648
        %v738 = vmul.f32 %v690, %v649
        %v739 = vmul.f32 %v691, %v649
        %v740 = vmul.f32 %v692, %v650
        %v741 = vmul.f32 %v693, %v650
        %v742 = vmul.f32 %v694, %v651
        %v743 = vmul.f32 %v695, %v651
        %v744 = vmul.f32 %v696, %v652
        %v745 = vmul.f32 %v697, %v652
        %v746 = vmul.f32 %v698, %v653
        %v747 = vmul.f32 %v699, %v653
        %v748 = vmul.f32 %v700, %v654
        %v749 = vmul.f32 %v701, %v654
        %v750 = vmul.f32 %v702, %v655
        %v751 = vmul.f32 %v703, %v655
        %v752 = vpack.c.bf16 %v706, %v704
        %v753 = vpack.c.bf16 %v707, %v705
        %v754 = vpack.c.bf16 %v710, %v708
        %v755 = vpack.c.bf16 %v711, %v709
        %v756 = vpack.c.bf16 %v714, %v712
        %v757 = vpack.c.bf16 %v715, %v713
        %v758 = vpack.c.bf16 %v718, %v716
        %v759 = vpack.c.bf16 %v719, %v717
        %v760 = vpack.c.bf16 %v722, %v720
        %v761 = vpack.c.bf16 %v723, %v721
        %v762 = vpack.c.bf16 %v726, %v724
        %v763 = vpack.c.bf16 %v727, %v725
        %v764 = vpack.c.bf16 %v730, %v728
        %v765 = vpack.c.bf16 %v731, %v729
        %v766 = vpack.c.bf16 %v734, %v732
        %v767 = vpack.c.bf16 %v735, %v733
        %v768 = vpack.c.bf16 %v738, %v736
        %v769 = vpack.c.bf16 %v739, %v737
        %v770 = vpack.c.bf16 %v742, %v740
        %v771 = vpack.c.bf16 %v743, %v741
        %v772 = vpack.c.bf16 %v746, %v744
        %v773 = vpack.c.bf16 %v747, %v745
        %v774 = vpack.c.bf16 %v750, %v748
        %v775 = vpack.c.bf16 %v751, %v749
        %v776 = vunpack.c.l.bf16 %v752
        %v777 = vunpack.c.l.bf16 %v753
        %v778 = vunpack.c.h.bf16 %v752
        %v779 = vunpack.c.h.bf16 %v753
        %v780 = vunpack.c.l.bf16 %v754
        %v781 = vunpack.c.l.bf16 %v755
        %v782 = vunpack.c.h.bf16 %v754
        %v783 = vunpack.c.h.bf16 %v755
        %v784 = vunpack.c.l.bf16 %v756
        %v785 = vunpack.c.l.bf16 %v757
        %v786 = vunpack.c.h.bf16 %v756
        %v787 = vunpack.c.h.bf16 %v757
        %v788 = vunpack.c.l.bf16 %v758
        %v789 = vunpack.c.l.bf16 %v759
        %v790 = vunpack.c.h.bf16 %v758
        %v791 = vunpack.c.h.bf16 %v759
        %v792 = vunpack.c.l.bf16 %v760
        %v793 = vunpack.c.l.bf16 %v761
        %v794 = vunpack.c.h.bf16 %v760
        %v795 = vunpack.c.h.bf16 %v761
        %v796 = vunpack.c.l.bf16 %v762
        %v797 = vunpack.c.l.bf16 %v763
        %v798 = vunpack.c.h.bf16 %v762
        %v799 = vunpack.c.h.bf16 %v763
        %v800 = vunpack.c.l.bf16 %v764
        %v801 = vunpack.c.l.bf16 %v765
        %v802 = vunpack.c.h.bf16 %v764
        %v803 = vunpack.c.h.bf16 %v765
        %v804 = vunpack.c.l.bf16 %v766
        %v805 = vunpack.c.l.bf16 %v767
        %v806 = vunpack.c.h.bf16 %v766
        %v807 = vunpack.c.h.bf16 %v767
        %v808 = vunpack.c.l.bf16 %v768
        %v809 = vunpack.c.l.bf16 %v769
        %v810 = vunpack.c.h.bf16 %v768
        %v811 = vunpack.c.h.bf16 %v769
        %v812 = vunpack.c.l.bf16 %v770
        %v813 = vunpack.c.l.bf16 %v771
        %v814 = vunpack.c.h.bf16 %v770
        %v815 = vunpack.c.h.bf16 %v771
        %v816 = vunpack.c.l.bf16 %v772
        %v817 = vunpack.c.l.bf16 %v773
        %v818 = vunpack.c.h.bf16 %v772
        %v819 = vunpack.c.h.bf16 %v773
        %v820 = vunpack.c.l.bf16 %v774
        %v821 = vunpack.c.l.bf16 %v775
        %v822 = vunpack.c.h.bf16 %v774
        %v823 = vunpack.c.h.bf16 %v775
        %v824 = vsub.f32 %v704, %v776
        %v825 = vsub.f32 %v705, %v777
        %v826 = vsub.f32 %v706, %v778
        %v827 = vsub.f32 %v707, %v779
        %v828 = vsub.f32 %v708, %v780
        %v829 = vsub.f32 %v709, %v781
        %v830 = vsub.f32 %v710, %v782
        %v831 = vsub.f32 %v711, %v783
        %v832 = vsub.f32 %v712, %v784
        %v833 = vsub.f32 %v713, %v785
        %v834 = vsub.f32 %v714, %v786
        %v835 = vsub.f32 %v715, %v787
        %v836 = vsub.f32 %v716, %v788
        %v837 = vsub.f32 %v717, %v789
        %v838 = vsub.f32 %v718, %v790
        %v839 = vsub.f32 %v719, %v791
        %v840 = vsub.f32 %v720, %v792
        %v841 = vsub.f32 %v721, %v793
        %v842 = vsub.f32 %v722, %v794
        %v843 = vsub.f32 %v723, %v795
        %v844 = vsub.f32 %v724, %v796
        %v845 = vsub.f32 %v725, %v797
        %v846 = vsub.f32 %v726, %v798
        %v847 = vsub.f32 %v727, %v799
        %v848 = vsub.f32 %v728, %v800
        %v849 = vsub.f32 %v729, %v801
        %v850 = vsub.f32 %v730, %v802
        %v851 = vsub.f32 %v731, %v803
        %v852 = vsub.f32 %v732, %v804
        %v853 = vsub.f32 %v733, %v805
        %v854 = vsub.f32 %v734, %v806
        %v855 = vsub.f32 %v735, %v807
        %v856 = vsub.f32 %v736, %v808
        %v857 = vsub.f32 %v737, %v809
        %v858 = vsub.f32 %v738, %v810
        %v859 = vsub.f32 %v739, %v811
        %v860 = vsub.f32 %v740, %v812
        %v861 = vsub.f32 %v741, %v813
        %v862 = vsub.f32 %v742, %v814
        %v863 = vsub.f32 %v743, %v815
        %v864 = vsub.f32 %v744, %v816
        %v865 = vsub.f32 %v745, %v817
        %v866 = vsub.f32 %v746, %v818
        %v867 = vsub.f32 %v747, %v819
        %v868 = vsub.f32 %v748, %v820
        %v869 = vsub.f32 %v749, %v821
        %v870 = vsub.f32 %v750, %v822
        %v871 = vsub.f32 %v751, %v823
        %v872 = vpack.c.bf16 %v826, %v824
        %v873 = vpack.c.bf16 %v827, %v825
        %v874 = vpack.c.bf16 %v830, %v828
        %v875 = vpack.c.bf16 %v831, %v829
        %v876 = vpack.c.bf16 %v834, %v832
        %v877 = vpack.c.bf16 %v835, %v833
        %v878 = vpack.c.bf16 %v838, %v836
        %v879 = vpack.c.bf16 %v839, %v837
        %v880 = vpack.c.bf16 %v842, %v840
        %v881 = vpack.c.bf16 %v843, %v841
        %v882 = vpack.c.bf16 %v846, %v844
        %v883 = vpack.c.bf16 %v847, %v845
        %v884 = vpack.c.bf16 %v850, %v848
        %v885 = vpack.c.bf16 %v851, %v849
        %v886 = vpack.c.bf16 %v854, %v852
        %v887 = vpack.c.bf16 %v855, %v853
        %v888 = vpack.c.bf16 %v858, %v856
        %v889 = vpack.c.bf16 %v859, %v857
        %v890 = vpack.c.bf16 %v862, %v860
        %v891 = vpack.c.bf16 %v863, %v861
        %v892 = vpack.c.bf16 %v866, %v864
        %v893 = vpack.c.bf16 %v867, %v865
        %v894 = vpack.c.bf16 %v870, %v868
        %v895 = vpack.c.bf16 %v871, %v869
        %v896 = vld [vmem:[#allocation5] sm:$0xff]
        %v897 = vld [vmem:[#allocation5 + $0x8] sm:$0xff]
        %v898 = vld [vmem:[#allocation5 + $0x10] sm:$0xff]
        %v899 = vld [vmem:[#allocation5 + $0x18] sm:$0xff]
        %v900 = vld [vmem:[#allocation5 + $0x20] sm:$0xff]
        %v901 = vld [vmem:[#allocation5 + $0x28] sm:$0xff]
        %v902 = vld [vmem:[#allocation5 + $0x30] sm:$0xff]
        %v903 = vld [vmem:[#allocation5 + $0x38] sm:$0xff]
        %v904 = vld [vmem:[#allocation5 + $0x40] sm:$0xff]
        %v905 = vld [vmem:[#allocation5 + $0x48] sm:$0xff]
        %v906 = vld [vmem:[#allocation5 + $0x50] sm:$0xff]
        %v907 = vld [vmem:[#allocation5 + $0x58] sm:$0xff]
        %v908 = vld [vmem:[#allocation5 + $0x60] sm:$0xff]
        %v909 = vld [vmem:[#allocation5 + $0x68] sm:$0xff]
        %v910 = vld [vmem:[#allocation5 + $0x70] sm:$0xff]
        %v911 = vld [vmem:[#allocation5 + $0x78] sm:$0xff]
        %v912 = vld [vmem:[#allocation5 + $0x80] sm:$0xff]
        %v913 = vld [vmem:[#allocation5 + $0x88] sm:$0xff]
        %v914 = vld [vmem:[#allocation5 + $0x90] sm:$0xff]
        %v915 = vld [vmem:[#allocation5 + $0x98] sm:$0xff]
        %v916 = vld [vmem:[#allocation5 + $0xa0] sm:$0xff]
        %v917 = vld [vmem:[#allocation5 + $0xa8] sm:$0xff]
        %v918 = vld [vmem:[#allocation5 + $0xb0] sm:$0xff]
        %v919 = vld [vmem:[#allocation5 + $0xb8] sm:$0xff]
        %v920 = vld [vmem:[#allocation5 + $0xc0] sm:$0xff]
        %v921 = vld [vmem:[#allocation5 + $0xc8] sm:$0xff]
        %v922 = vld [vmem:[#allocation5 + $0xd0] sm:$0xff]
        %v923 = vld [vmem:[#allocation5 + $0xd8] sm:$0xff]
        %v924 = vld [vmem:[#allocation5 + $0xe0] sm:$0xff]
        %v925 = vld [vmem:[#allocation5 + $0xe8] sm:$0xff]
        %v926 = vld [vmem:[#allocation5 + $0xf0] sm:$0xff]
        %v927 = vld [vmem:[#allocation5 + $0xf8] sm:$0xff]
        %v928 = vld [vmem:[#allocation7] sm:$0xff]
        %v929 = vld [vmem:[#allocation7 + $0x8] sm:$0xff]
        %v930 = vld [vmem:[#allocation7 + $0x10] sm:$0xff]
        %v931 = vld [vmem:[#allocation7 + $0x18] sm:$0xff]
        %v932 = vld [vmem:[#allocation7 + $0x20] sm:$0xff]
        %v933 = vld [vmem:[#allocation7 + $0x28] sm:$0xff]
        %v934 = vld [vmem:[#allocation7 + $0x30] sm:$0xff]
        %v935 = vld [vmem:[#allocation7 + $0x38] sm:$0xff]
        %v936 = vld [vmem:[#allocation7 + $0x40] sm:$0xff]
        %v937 = vld [vmem:[#allocation7 + $0x48] sm:$0xff]
        %v938 = vld [vmem:[#allocation7 + $0x50] sm:$0xff]
        %v939 = vld [vmem:[#allocation7 + $0x58] sm:$0xff]
        %v940 = vld [vmem:[#allocation7 + $0x60] sm:$0xff]
        %v941 = vld [vmem:[#allocation7 + $0x68] sm:$0xff]
        %v942 = vld [vmem:[#allocation7 + $0x70] sm:$0xff]
        %v943 = vld [vmem:[#allocation7 + $0x78] sm:$0xff]
        %v944 = vld [vmem:[#allocation7 + $0x80] sm:$0xff]
        %v945 = vld [vmem:[#allocation7 + $0x88] sm:$0xff]
        %v946 = vld [vmem:[#allocation7 + $0x90] sm:$0xff]
        %v947 = vld [vmem:[#allocation7 + $0x98] sm:$0xff]
        %v948 = vld [vmem:[#allocation7 + $0xa0] sm:$0xff]
        %v949 = vld [vmem:[#allocation7 + $0xa8] sm:$0xff]
        %v950 = vld [vmem:[#allocation7 + $0xb0] sm:$0xff]
        %v951 = vld [vmem:[#allocation7 + $0xb8] sm:$0xff]
        %v952 = vld [vmem:[#allocation7 + $0xc0] sm:$0xff]
        %v953 = vld [vmem:[#allocation7 + $0xc8] sm:$0xff]
        %v954 = vld [vmem:[#allocation7 + $0xd0] sm:$0xff]
        %v955 = vld [vmem:[#allocation7 + $0xd8] sm:$0xff]
        %v956 = vld [vmem:[#allocation7 + $0xe0] sm:$0xff]
        %v957 = vld [vmem:[#allocation7 + $0xe8] sm:$0xff]
        %v958 = vld [vmem:[#allocation7 + $0xf0] sm:$0xff]
        %v959 = vld [vmem:[#allocation7 + $0xf8] sm:$0xff]
        %v992 = vunpack.c.l.b16 %v896
        %v993 = vunpack.c.h.b16 %v896
        %v994 = vunpack.c.l.b16 %v897
        %v995 = vunpack.c.h.b16 %v897
        %v996 = vunpack.c.l.b16 %v898
        %v997 = vunpack.c.h.b16 %v898
        %v998 = vunpack.c.l.b16 %v899
        %v999 = vunpack.c.h.b16 %v899
        %v1000 = vunpack.c.l.b16 %v900
        %v1001 = vunpack.c.h.b16 %v900
        %v1002 = vunpack.c.l.b16 %v901
        %v1003 = vunpack.c.h.b16 %v901
        %v1004 = vunpack.c.l.b16 %v902
        %v1005 = vunpack.c.h.b16 %v902
        %v1006 = vunpack.c.l.b16 %v903
        %v1007 = vunpack.c.h.b16 %v903
        %v1008 = vunpack.c.l.b16 %v904
        %v1009 = vunpack.c.h.b16 %v904
        %v1010 = vunpack.c.l.b16 %v905
        %v1011 = vunpack.c.h.b16 %v905
        %v1012 = vunpack.c.l.b16 %v906
        %v1013 = vunpack.c.h.b16 %v906
        %v1014 = vunpack.c.l.b16 %v907
        %v1015 = vunpack.c.h.b16 %v907
        %v1016 = vunpack.c.l.b16 %v908
        %v1017 = vunpack.c.h.b16 %v908
        %v1018 = vunpack.c.l.b16 %v909
        %v1019 = vunpack.c.h.b16 %v909
        %v1020 = vunpack.c.l.b16 %v910
        %v1021 = vunpack.c.h.b16 %v910
        %v1022 = vunpack.c.l.b16 %v911
        %v1023 = vunpack.c.h.b16 %v911
        %v1024 = vunpack.c.l.b16 %v912
        %v1025 = vunpack.c.h.b16 %v912
        %v1026 = vunpack.c.l.b16 %v913
        %v1027 = vunpack.c.h.b16 %v913
        %v1028 = vunpack.c.l.b16 %v914
        %v1029 = vunpack.c.h.b16 %v914
        %v1030 = vunpack.c.l.b16 %v915
        %v1031 = vunpack.c.h.b16 %v915
        %v1032 = vunpack.c.l.b16 %v916
        %v1033 = vunpack.c.h.b16 %v916
        %v1034 = vunpack.c.l.b16 %v917
        %v1035 = vunpack.c.h.b16 %v917
        %v1036 = vunpack.c.l.b16 %v918
        %v1037 = vunpack.c.h.b16 %v918
        %v1038 = vunpack.c.l.b16 %v919
        %v1039 = vunpack.c.h.b16 %v919
        %v1040 = vunpack.c.l.b16 %v920
        %v1041 = vunpack.c.h.b16 %v920
        %v1042 = vunpack.c.l.b16 %v921
        %v1043 = vunpack.c.h.b16 %v921
        %v1044 = vunpack.c.l.b16 %v922
        %v1045 = vunpack.c.h.b16 %v922
        %v1046 = vunpack.c.l.b16 %v923
        %v1047 = vunpack.c.h.b16 %v923
        %v1048 = vunpack.c.l.b16 %v924
        %v1049 = vunpack.c.h.b16 %v924
        %v1050 = vunpack.c.l.b16 %v925
        %v1051 = vunpack.c.h.b16 %v925
        %v1052 = vunpack.c.l.b16 %v926
        %v1053 = vunpack.c.h.b16 %v926
        %v1054 = vunpack.c.l.b16 %v927
        %v1055 = vunpack.c.h.b16 %v927
        %v1056 = vpack.c.b16 %v994, %v992
        %v1057 = vpack.c.b16 %v995, %v993
        %v1058 = vpack.c.b16 %v998, %v996
        %v1059 = vpack.c.b16 %v999, %v997
        %v1060 = vpack.c.b16 %v1002, %v1000
        %v1061 = vpack.c.b16 %v1003, %v1001
        %v1062 = vpack.c.b16 %v1006, %v1004
        %v1063 = vpack.c.b16 %v1007, %v1005
        %v1064 = vpack.c.b16 %v1010, %v1008
        %v1065 = vpack.c.b16 %v1011, %v1009
        %v1066 = vpack.c.b16 %v1014, %v1012
        %v1067 = vpack.c.b16 %v1015, %v1013
        %v1068 = vpack.c.b16 %v1018, %v1016
        %v1069 = vpack.c.b16 %v1019, %v1017
        %v1070 = vpack.c.b16 %v1022, %v1020
        %v1071 = vpack.c.b16 %v1023, %v1021
        %v1072 = vpack.c.b16 %v1026, %v1024
        %v1073 = vpack.c.b16 %v1027, %v1025
        %v1074 = vpack.c.b16 %v1030, %v1028
        %v1075 = vpack.c.b16 %v1031, %v1029
        %v1076 = vpack.c.b16 %v1034, %v1032
        %v1077 = vpack.c.b16 %v1035, %v1033
        %v1078 = vpack.c.b16 %v1038, %v1036
        %v1079 = vpack.c.b16 %v1039, %v1037
        %v1080 = vpack.c.b16 %v1042, %v1040
        %v1081 = vpack.c.b16 %v1043, %v1041
        %v1082 = vpack.c.b16 %v1046, %v1044
        %v1083 = vpack.c.b16 %v1047, %v1045
        %v1084 = vpack.c.b16 %v1050, %v1048
        %v1085 = vpack.c.b16 %v1051, %v1049
        %v1086 = vpack.c.b16 %v1054, %v1052
        %v1087 = vpack.c.b16 %v1055, %v1053
        %1120 = vmatprep.subr.bf16.mxu0 %v1057
        %1121 = vmatpush1.bf16.msra.mxu0 %v1056
        %1122 = vmatprep.subr.bf16.mxu0 %v1059
        %1123 = vmatpush1.bf16.msra.mxu0 %v1058
        %1124 = vmatprep.subr.bf16.mxu0 %v1061
        %1125 = vmatpush1.bf16.msra.mxu0 %v1060
        %1126 = vmatprep.subr.bf16.mxu0 %v1063
        %1127 = vmatpush1.bf16.msra.mxu0 %v1062
        %1128 = vmatprep.subr.bf16.mxu0 %v1065
        %1129 = vmatpush1.bf16.msra.mxu0 %v1064
        %1130 = vmatprep.subr.bf16.mxu0 %v1067
        %1131 = vmatpush1.bf16.msra.mxu0 %v1066
        %1132 = vmatprep.subr.bf16.mxu0 %v1069
        %1133 = vmatpush1.bf16.msra.mxu0 %v1068
        %1134 = vmatprep.subr.bf16.mxu0 %v1071
        %1135 = vmatpush1.bf16.msra.mxu0 %v1070
        %1136 = vmatprep.subr.bf16.mxu0 %v1073
        %1137 = vmatpush1.bf16.msra.mxu0 %v1072
        %1138 = vmatprep.subr.bf16.mxu0 %v1075
        %1139 = vmatpush1.bf16.msra.mxu0 %v1074
        %1140 = vmatprep.subr.bf16.mxu0 %v1077
        %1141 = vmatpush1.bf16.msra.mxu0 %v1076
        %1142 = vmatprep.subr.bf16.mxu0 %v1079
        %1143 = vmatpush1.bf16.msra.mxu0 %v1078
        %1144 = vmatprep.subr.bf16.mxu0 %v1081
        %1145 = vmatpush1.bf16.msra.mxu0 %v1080
        %1146 = vmatprep.subr.bf16.mxu0 %v1083
        %1147 = vmatpush1.bf16.msra.mxu0 %v1082
        %1148 = vmatprep.subr.bf16.mxu0 %v1085
        %1149 = vmatpush1.bf16.msra.mxu0 %v1084
        %1150 = vmatprep.subr.bf16.mxu0 %v1087
        %1151 = vmatpush1.bf16.msra.mxu0 %v1086
        %1152 = vmatprep.mubr.bf16.mxu0 %v873
        %1153 = vmatmul.mubr.bf16.gmra.mrb[0].mxu0 %v872
        %v1154 = vpop.f32.mrb[0].mxu0
        %v1155 = vadd.f32 0.0, %v1154
        %v1156 = vpop.f32.mrb[0].mxu0
        %v1157 = vadd.f32 0.0, %v1156
        %v1158 = vpop.f32.mrb[0].mxu0
        %v1159 = vadd.f32 0.0, %v1158
        %v1160 = vpop.f32.mrb[0].mxu0
        %v1161 = vadd.f32 0.0, %v1160
        %1162 = vmatprep.mubr.bf16.mxu0 %v875
        %1163 = vmatmul.mubr.bf16.gmra.mrb[0].mxu0 %v874
        %v1164 = vpop.f32.mrb[0].mxu0
        %v1165 = vadd.f32 0.0, %v1164
        %v1166 = vpop.f32.mrb[0].mxu0
        %v1167 = vadd.f32 0.0, %v1166
        %v1168 = vpop.f32.mrb[0].mxu0
        %v1169 = vadd.f32 0.0, %v1168
        %v1170 = vpop.f32.mrb[0].mxu0
        %v1171 = vadd.f32 0.0, %v1170
        %1172 = vmatprep.mubr.bf16.mxu0 %v877
        %1173 = vmatmul.mubr.bf16.gmra.mrb[0].mxu0 %v876
        %v1174 = vpop.f32.mrb[0].mxu0
        %v1175 = vadd.f32 0.0, %v1174
        %v1176 = vpop.f32.mrb[0].mxu0
        %v1177 = vadd.f32 0.0, %v1176
        %v1178 = vpop.f32.mrb[0].mxu0
        %v1179 = vadd.f32 0.0, %v1178
        %v1180 = vpop.f32.mrb[0].mxu0
        %v1181 = vadd.f32 0.0, %v1180
        %1182 = vmatprep.mubr.bf16.mxu0 %v879
        %1183 = vmatmul.mubr.bf16.gmra.mrb[0].mxu0 %v878
        %v1184 = vpop.f32.mrb[0].mxu0
        %v1185 = vadd.f32 0.0, %v1184
        %v1186 = vpop.f32.mrb[0].mxu0
        %v1187 = vadd.f32 0.0, %v1186
        %v1188 = vpop.f32.mrb[0].mxu0
        %v1189 = vadd.f32 0.0, %v1188
        %v1190 = vpop.f32.mrb[0].mxu0
        %v1191 = vadd.f32 0.0, %v1190
        %1192 = vmatprep.mubr.bf16.mxu0 %v881
        %1193 = vmatmul.mubr.bf16.gmra.mrb[0].mxu0 %v880
        %v1194 = vpop.f32.mrb[0].mxu0
        %v1195 = vadd.f32 0.0, %v1194
        %v1196 = vpop.f32.mrb[0].mxu0
        %v1197 = vadd.f32 0.0, %v1196
        %v1198 = vpop.f32.mrb[0].mxu0
        %v1199 = vadd.f32 0.0, %v1198
        %v1200 = vpop.f32.mrb[0].mxu0
        %v1201 = vadd.f32 0.0, %v1200
        %1202 = vmatprep.mubr.bf16.mxu0 %v883
        %1203 = vmatmul.mubr.bf16.gmra.mrb[0].mxu0 %v882
        %v1204 = vpop.f32.mrb[0].mxu0
        %v1205 = vadd.f32 0.0, %v1204
        %v1206 = vpop.f32.mrb[0].mxu0
        %v1207 = vadd.f32 0.0, %v1206
        %v1208 = vpop.f32.mrb[0].mxu0
        %v1209 = vadd.f32 0.0, %v1208
        %v1210 = vpop.f32.mrb[0].mxu0
        %v1211 = vadd.f32 0.0, %v1210
        %1212 = vmatprep.mubr.bf16.mxu0 %v885
        %1213 = vmatmul.mubr.bf16.gmra.mrb[0].mxu0 %v884
        %v1214 = vpop.f32.mrb[0].mxu0
        %v1215 = vadd.f32 0.0, %v1214
        %v1216 = vpop.f32.mrb[0].mxu0
        %v1217 = vadd.f32 0.0, %v1216
        %v1218 = vpop.f32.mrb[0].mxu0
        %v1219 = vadd.f32 0.0, %v1218
        %v1220 = vpop.f32.mrb[0].mxu0
        %v1221 = vadd.f32 0.0, %v1220
        %1222 = vmatprep.mubr.bf16.mxu0 %v887
        %1223 = vmatmul.mubr.bf16.gmra.mrb[0].mxu0 %v886
        %v1224 = vpop.f32.mrb[0].mxu0
        %v1225 = vadd.f32 0.0, %v1224
        %v1226 = vpop.f32.mrb[0].mxu0
        %v1227 = vadd.f32 0.0, %v1226
        %v1228 = vpop.f32.mrb[0].mxu0
        %v1229 = vadd.f32 0.0, %v1228
        %v1230 = vpop.f32.mrb[0].mxu0
        %v1231 = vadd.f32 0.0, %v1230
        %1232 = vmatprep.mubr.bf16.mxu0 %v889
        %1233 = vmatmul.mubr.bf16.gmra.mrb[0].mxu0 %v888
        %v1234 = vpop.f32.mrb[0].mxu0
        %v1235 = vadd.f32 0.0, %v1234
        %v1236 = vpop.f32.mrb[0].mxu0
        %v1237 = vadd.f32 0.0, %v1236
        %v1238 = vpop.f32.mrb[0].mxu0
        %v1239 = vadd.f32 0.0, %v1238
        %v1240 = vpop.f32.mrb[0].mxu0
        %v1241 = vadd.f32 0.0, %v1240
        %1242 = vmatprep.mubr.bf16.mxu0 %v891
        %1243 = vmatmul.mubr.bf16.gmra.mrb[0].mxu0 %v890
        %v1244 = vpop.f32.mrb[0].mxu0
        %v1245 = vadd.f32 0.0, %v1244
        %v1246 = vpop.f32.mrb[0].mxu0
        %v1247 = vadd.f32 0.0, %v1246
        %v1248 = vpop.f32.mrb[0].mxu0
        %v1249 = vadd.f32 0.0, %v1248
        %v1250 = vpop.f32.mrb[0].mxu0
        %v1251 = vadd.f32 0.0, %v1250
        %1252 = vmatprep.mubr.bf16.mxu0 %v893
        %1253 = vmatmul.mubr.bf16.gmra.mrb[0].mxu0 %v892
        %v1254 = vpop.f32.mrb[0].mxu0
        %v1255 = vadd.f32 0.0, %v1254
        %v1256 = vpop.f32.mrb[0].mxu0
        %v1257 = vadd.f32 0.0, %v1256
        %v1258 = vpop.f32.mrb[0].mxu0
        %v1259 = vadd.f32 0.0, %v1258
        %v1260 = vpop.f32.mrb[0].mxu0
        %v1261 = vadd.f32 0.0, %v1260
        %1262 = vmatprep.mubr.bf16.mxu0 %v895
        %1263 = vmatmul.mubr.bf16.gmra.mrb[0].mxu0 %v894
        %v1264 = vpop.f32.mrb[0].mxu0
        %v1265 = vadd.f32 0.0, %v1264
        %v1266 = vpop.f32.mrb[0].mxu0
        %v1267 = vadd.f32 0.0, %v1266
        %v1268 = vpop.f32.mrb[0].mxu0
        %v1269 = vadd.f32 0.0, %v1268
        %v1270 = vpop.f32.mrb[0].mxu0
        %v1271 = vadd.f32 0.0, %v1270
        %1272 = vdwg.mxu0
        %1273 = vmatprep.subr.bf16.mxu0 %v1057
        %1274 = vmatpush1.bf16.msra.mxu0 %v1056
        %1275 = vmatprep.subr.bf16.mxu0 %v1059
        %1276 = vmatpush1.bf16.msra.mxu0 %v1058
        %1277 = vmatprep.subr.bf16.mxu0 %v1061
        %1278 = vmatpush1.bf16.msra.mxu0 %v1060
        %1279 = vmatprep.subr.bf16.mxu0 %v1063
        %1280 = vmatpush1.bf16.msra.mxu0 %v1062
        %1281 = vmatprep.subr.bf16.mxu0 %v1065
        %1282 = vmatpush1.bf16.msra.mxu0 %v1064
        %1283 = vmatprep.subr.bf16.mxu0 %v1067
        %1284 = vmatpush1.bf16.msra.mxu0 %v1066
        %1285 = vmatprep.subr.bf16.mxu0 %v1069
        %1286 = vmatpush1.bf16.msra.mxu0 %v1068
        %1287 = vmatprep.subr.bf16.mxu0 %v1071
        %1288 = vmatpush1.bf16.msra.mxu0 %v1070
        %1289 = vmatprep.subr.bf16.mxu0 %v1073
        %1290 = vmatpush1.bf16.msra.mxu0 %v1072
        %1291 = vmatprep.subr.bf16.mxu0 %v1075
        %1292 = vmatpush1.bf16.msra.mxu0 %v1074
        %1293 = vmatprep.subr.bf16.mxu0 %v1077
        %1294 = vmatpush1.bf16.msra.mxu0 %v1076
        %1295 = vmatprep.subr.bf16.mxu0 %v1079
        %1296 = vmatpush1.bf16.msra.mxu0 %v1078
        %1297 = vmatprep.subr.bf16.mxu0 %v1081
        %1298 = vmatpush1.bf16.msra.mxu0 %v1080
        %1299 = vmatprep.subr.bf16.mxu0 %v1083
        %1300 = vmatpush1.bf16.msra.mxu0 %v1082
        %1301 = vmatprep.subr.bf16.mxu0 %v1085
        %1302 = vmatpush1.bf16.msra.mxu0 %v1084
        %1303 = vmatprep.subr.bf16.mxu0 %v1087
        %1304 = vmatpush1.bf16.msra.mxu0 %v1086
        %1305 = vmatprep.mubr.bf16.mxu0 %v753
        %1306 = vmatmul.mubr.bf16.gmra.mrb[0].mxu0 %v752
        %v1307 = vpop.f32.mrb[0].mxu0
        %v1308 = vadd.f32 %v1155, %v1307
        %v1309 = vpop.f32.mrb[0].mxu0
        %v1310 = vadd.f32 %v1157, %v1309
        %v1311 = vpop.f32.mrb[0].mxu0
        %v1312 = vadd.f32 %v1159, %v1311
        %v1313 = vpop.f32.mrb[0].mxu0
        %v1314 = vadd.f32 %v1161, %v1313
        %1315 = vmatprep.mubr.bf16.mxu0 %v755
        %1316 = vmatmul.mubr.bf16.gmra.mrb[0].mxu0 %v754
        %v1317 = vpop.f32.mrb[0].mxu0
        %v1318 = vadd.f32 %v1165, %v1317
        %v1319 = vpop.f32.mrb[0].mxu0
        %v1320 = vadd.f32 %v1167, %v1319
        %v1321 = vpop.f32.mrb[0].mxu0
        %v1322 = vadd.f32 %v1169, %v1321
        %v1323 = vpop.f32.mrb[0].mxu0
        %v1324 = vadd.f32 %v1171, %v1323
        %1325 = vmatprep.mubr.bf16.mxu0 %v757
        %1326 = vmatmul.mubr.bf16.gmra.mrb[0].mxu0 %v756
        %v1327 = vpop.f32.mrb[0].mxu0
        %v1328 = vadd.f32 %v1175, %v1327
        %v1329 = vpop.f32.mrb[0].mxu0
        %v1330 = vadd.f32 %v1177, %v1329
        %v1331 = vpop.f32.mrb[0].mxu0
        %v1332 = vadd.f32 %v1179, %v1331
        %v1333 = vpop.f32.mrb[0].mxu0
        %v1334 = vadd.f32 %v1181, %v1333
        %1335 = vmatprep.mubr.bf16.mxu0 %v759
        %1336 = vmatmul.mubr.bf16.gmra.mrb[0].mxu0 %v758
        %v1337 = vpop.f32.mrb[0].mxu0
        %v1338 = vadd.f32 %v1185, %v1337
        %v1339 = vpop.f32.mrb[0].mxu0
        %v1340 = vadd.f32 %v1187, %v1339
        %v1341 = vpop.f32.mrb[0].mxu0
        %v1342 = vadd.f32 %v1189, %v1341
        %v1343 = vpop.f32.mrb[0].mxu0
        %v1344 = vadd.f32 %v1191, %v1343
        %1345 = vmatprep.mubr.bf16.mxu0 %v761
        %1346 = vmatmul.mubr.bf16.gmra.mrb[0].mxu0 %v760
        %v1347 = vpop.f32.mrb[0].mxu0
        %v1348 = vadd.f32 %v1195, %v1347
        %v1349 = vpop.f32.mrb[0].mxu0
        %v1350 = vadd.f32 %v1197, %v1349
        %v1351 = vpop.f32.mrb[0].mxu0
        %v1352 = vadd.f32 %v1199, %v1351
        %v1353 = vpop.f32.mrb[0].mxu0
        %v1354 = vadd.f32 %v1201, %v1353
        %1355 = vmatprep.mubr.bf16.mxu0 %v763
        %1356 = vmatmul.mubr.bf16.gmra.mrb[0].mxu0 %v762
        %v1357 = vpop.f32.mrb[0].mxu0
        %v1358 = vadd.f32 %v1205, %v1357
        %v1359 = vpop.f32.mrb[0].mxu0
        %v1360 = vadd.f32 %v1207, %v1359
        %v1361 = vpop.f32.mrb[0].mxu0
        %v1362 = vadd.f32 %v1209, %v1361
        %v1363 = vpop.f32.mrb[0].mxu0
        %v1364 = vadd.f32 %v1211, %v1363
        %1365 = vmatprep.mubr.bf16.mxu0 %v765
        %1366 = vmatmul.mubr.bf16.gmra.mrb[0].mxu0 %v764
        %v1367 = vpop.f32.mrb[0].mxu0
        %v1368 = vadd.f32 %v1215, %v1367
        %v1369 = vpop.f32.mrb[0].mxu0
        %v1370 = vadd.f32 %v1217, %v1369
        %v1371 = vpop.f32.mrb[0].mxu0
        %v1372 = vadd.f32 %v1219, %v1371
        %v1373 = vpop.f32.mrb[0].mxu0
        %v1374 = vadd.f32 %v1221, %v1373
        %1375 = vmatprep.mubr.bf16.mxu0 %v767
        %1376 = vmatmul.mubr.bf16.gmra.mrb[0].mxu0 %v766
        %v1377 = vpop.f32.mrb[0].mxu0
        %v1378 = vadd.f32 %v1225, %v1377
        %v1379 = vpop.f32.mrb[0].mxu0
        %v1380 = vadd.f32 %v1227, %v1379
        %v1381 = vpop.f32.mrb[0].mxu0
        %v1382 = vadd.f32 %v1229, %v1381
        %v1383 = vpop.f32.mrb[0].mxu0
        %v1384 = vadd.f32 %v1231, %v1383
        %1385 = vmatprep.mubr.bf16.mxu0 %v769
        %1386 = vmatmul.mubr.bf16.gmra.mrb[0].mxu0 %v768
        %v1387 = vpop.f32.mrb[0].mxu0
        %v1388 = vadd.f32 %v1235, %v1387
        %v1389 = vpop.f32.mrb[0].mxu0
        %v1390 = vadd.f32 %v1237, %v1389
        %v1391 = vpop.f32.mrb[0].mxu0
        %v1392 = vadd.f32 %v1239, %v1391
        %v1393 = vpop.f32.mrb[0].mxu0
        %v1394 = vadd.f32 %v1241, %v1393
        %1395 = vmatprep.mubr.bf16.mxu0 %v771
        %1396 = vmatmul.mubr.bf16.gmra.mrb[0].mxu0 %v770
        %v1397 = vpop.f32.mrb[0].mxu0
        %v1398 = vadd.f32 %v1245, %v1397
        %v1399 = vpop.f32.mrb[0].mxu0
        %v1400 = vadd.f32 %v1247, %v1399
        %v1401 = vpop.f32.mrb[0].mxu0
        %v1402 = vadd.f32 %v1249, %v1401
        %v1403 = vpop.f32.mrb[0].mxu0
        %v1404 = vadd.f32 %v1251, %v1403
        %1405 = vmatprep.mubr.bf16.mxu0 %v773
        %1406 = vmatmul.mubr.bf16.gmra.mrb[0].mxu0 %v772
        %v1407 = vpop.f32.mrb[0].mxu0
        %v1408 = vadd.f32 %v1255, %v1407
        %v1409 = vpop.f32.mrb[0].mxu0
        %v1410 = vadd.f32 %v1257, %v1409
        %v1411 = vpop.f32.mrb[0].mxu0
        %v1412 = vadd.f32 %v1259, %v1411
        %v1413 = vpop.f32.mrb[0].mxu0
        %v1414 = vadd.f32 %v1261, %v1413
        %1415 = vmatprep.mubr.bf16.mxu0 %v775
        %1416 = vmatmul.mubr.bf16.gmra.mrb[0].mxu0 %v774
        %v1417 = vpop.f32.mrb[0].mxu0
        %v1418 = vadd.f32 %v1265, %v1417
        %v1419 = vpop.f32.mrb[0].mxu0
        %v1420 = vadd.f32 %v1267, %v1419
        %v1421 = vpop.f32.mrb[0].mxu0
        %v1422 = vadd.f32 %v1269, %v1421
        %v1423 = vpop.f32.mrb[0].mxu0
        %v1424 = vadd.f32 %v1271, %v1423
        %1425 = vdwg.mxu0
        %v1458 = vunpack.c.l.b16 %v928
        %v1459 = vunpack.c.h.b16 %v928
        %v1460 = vunpack.c.l.b16 %v929
        %v1461 = vunpack.c.h.b16 %v929
        %v1462 = vunpack.c.l.b16 %v930
        %v1463 = vunpack.c.h.b16 %v930
        %v1464 = vunpack.c.l.b16 %v931
        %v1465 = vunpack.c.h.b16 %v931
        %v1466 = vunpack.c.l.b16 %v932
        %v1467 = vunpack.c.h.b16 %v932
        %v1468 = vunpack.c.l.b16 %v933
        %v1469 = vunpack.c.h.b16 %v933
        %v1470 = vunpack.c.l.b16 %v934
        %v1471 = vunpack.c.h.b16 %v934
        %v1472 = vunpack.c.l.b16 %v935
        %v1473 = vunpack.c.h.b16 %v935
        %v1474 = vunpack.c.l.b16 %v936
        %v1475 = vunpack.c.h.b16 %v936
        %v1476 = vunpack.c.l.b16 %v937
        %v1477 = vunpack.c.h.b16 %v937
        %v1478 = vunpack.c.l.b16 %v938
        %v1479 = vunpack.c.h.b16 %v938
        %v1480 = vunpack.c.l.b16 %v939
        %v1481 = vunpack.c.h.b16 %v939
        %v1482 = vunpack.c.l.b16 %v940
        %v1483 = vunpack.c.h.b16 %v940
        %v1484 = vunpack.c.l.b16 %v941
        %v1485 = vunpack.c.h.b16 %v941
        %v1486 = vunpack.c.l.b16 %v942
        %v1487 = vunpack.c.h.b16 %v942
        %v1488 = vunpack.c.l.b16 %v943
        %v1489 = vunpack.c.h.b16 %v943
        %v1490 = vunpack.c.l.b16 %v944
        %v1491 = vunpack.c.h.b16 %v944
        %v1492 = vunpack.c.l.b16 %v945
        %v1493 = vunpack.c.h.b16 %v945
        %v1494 = vunpack.c.l.b16 %v946
        %v1495 = vunpack.c.h.b16 %v946
        %v1496 = vunpack.c.l.b16 %v947
        %v1497 = vunpack.c.h.b16 %v947
        %v1498 = vunpack.c.l.b16 %v948
        %v1499 = vunpack.c.h.b16 %v948
        %v1500 = vunpack.c.l.b16 %v949
        %v1501 = vunpack.c.h.b16 %v949
        %v1502 = vunpack.c.l.b16 %v950
        %v1503 = vunpack.c.h.b16 %v950
        %v1504 = vunpack.c.l.b16 %v951
        %v1505 = vunpack.c.h.b16 %v951
        %v1506 = vunpack.c.l.b16 %v952
        %v1507 = vunpack.c.h.b16 %v952
        %v1508 = vunpack.c.l.b16 %v953
        %v1509 = vunpack.c.h.b16 %v953
        %v1510 = vunpack.c.l.b16 %v954
        %v1511 = vunpack.c.h.b16 %v954
        %v1512 = vunpack.c.l.b16 %v955
        %v1513 = vunpack.c.h.b16 %v955
        %v1514 = vunpack.c.l.b16 %v956
        %v1515 = vunpack.c.h.b16 %v956
        %v1516 = vunpack.c.l.b16 %v957
        %v1517 = vunpack.c.h.b16 %v957
        %v1518 = vunpack.c.l.b16 %v958
        %v1519 = vunpack.c.h.b16 %v958
        %v1520 = vunpack.c.l.b16 %v959
        %v1521 = vunpack.c.h.b16 %v959
        %v1522 = vpack.c.b16 %v1460, %v1458
        %v1523 = vpack.c.b16 %v1461, %v1459
        %v1524 = vpack.c.b16 %v1464, %v1462
        %v1525 = vpack.c.b16 %v1465, %v1463
        %v1526 = vpack.c.b16 %v1468, %v1466
        %v1527 = vpack.c.b16 %v1469, %v1467
        %v1528 = vpack.c.b16 %v1472, %v1470
        %v1529 = vpack.c.b16 %v1473, %v1471
        %v1530 = vpack.c.b16 %v1476, %v1474
        %v1531 = vpack.c.b16 %v1477, %v1475
        %v1532 = vpack.c.b16 %v1480, %v1478
        %v1533 = vpack.c.b16 %v1481, %v1479
        %v1534 = vpack.c.b16 %v1484, %v1482
        %v1535 = vpack.c.b16 %v1485, %v1483
        %v1536 = vpack.c.b16 %v1488, %v1486
        %v1537 = vpack.c.b16 %v1489, %v1487
        %v1538 = vpack.c.b16 %v1492, %v1490
        %v1539 = vpack.c.b16 %v1493, %v1491
        %v1540 = vpack.c.b16 %v1496, %v1494
        %v1541 = vpack.c.b16 %v1497, %v1495
        %v1542 = vpack.c.b16 %v1500, %v1498
        %v1543 = vpack.c.b16 %v1501, %v1499
        %v1544 = vpack.c.b16 %v1504, %v1502
        %v1545 = vpack.c.b16 %v1505, %v1503
        %v1546 = vpack.c.b16 %v1508, %v1506
        %v1547 = vpack.c.b16 %v1509, %v1507
        %v1548 = vpack.c.b16 %v1512, %v1510
        %v1549 = vpack.c.b16 %v1513, %v1511
        %v1550 = vpack.c.b16 %v1516, %v1514
        %v1551 = vpack.c.b16 %v1517, %v1515
        %v1552 = vpack.c.b16 %v1520, %v1518
        %v1553 = vpack.c.b16 %v1521, %v1519
        %1586 = vmatprep.subr.bf16.mxu0 %v1523
        %1587 = vmatpush1.bf16.msra.mxu0 %v1522
        %1588 = vmatprep.subr.bf16.mxu0 %v1525
        %1589 = vmatpush1.bf16.msra.mxu0 %v1524
        %1590 = vmatprep.subr.bf16.mxu0 %v1527
        %1591 = vmatpush1.bf16.msra.mxu0 %v1526
        %1592 = vmatprep.subr.bf16.mxu0 %v1529
        %1593 = vmatpush1.bf16.msra.mxu0 %v1528
        %1594 = vmatprep.subr.bf16.mxu0 %v1531
        %1595 = vmatpush1.bf16.msra.mxu0 %v1530
        %1596 = vmatprep.subr.bf16.mxu0 %v1533
        %1597 = vmatpush1.bf16.msra.mxu0 %v1532
        %1598 = vmatprep.subr.bf16.mxu0 %v1535
        %1599 = vmatpush1.bf16.msra.mxu0 %v1534
        %1600 = vmatprep.subr.bf16.mxu0 %v1537
        %1601 = vmatpush1.bf16.msra.mxu0 %v1536
        %1602 = vmatprep.subr.bf16.mxu0 %v1539
        %1603 = vmatpush1.bf16.msra.mxu0 %v1538
        %1604 = vmatprep.subr.bf16.mxu0 %v1541
        %1605 = vmatpush1.bf16.msra.mxu0 %v1540
        %1606 = vmatprep.subr.bf16.mxu0 %v1543
        %1607 = vmatpush1.bf16.msra.mxu0 %v1542
        %1608 = vmatprep.subr.bf16.mxu0 %v1545
        %1609 = vmatpush1.bf16.msra.mxu0 %v1544
        %1610 = vmatprep.subr.bf16.mxu0 %v1547
        %1611 = vmatpush1.bf16.msra.mxu0 %v1546
        %1612 = vmatprep.subr.bf16.mxu0 %v1549
        %1613 = vmatpush1.bf16.msra.mxu0 %v1548
        %1614 = vmatprep.subr.bf16.mxu0 %v1551
        %1615 = vmatpush1.bf16.msra.mxu0 %v1550
        %1616 = vmatprep.subr.bf16.mxu0 %v1553
        %1617 = vmatpush1.bf16.msra.mxu0 %v1552
        %1618 = vmatprep.mubr.bf16.mxu0 %v753
        %1619 = vmatmul.mubr.bf16.gmra.mrb[0].mxu0 %v752
        %v1620 = vpop.f32.mrb[0].mxu0
        %v1621 = vadd.f32 0.0, %v1620
        %v1622 = vpop.f32.mrb[0].mxu0
        %v1623 = vadd.f32 0.0, %v1622
        %v1624 = vpop.f32.mrb[0].mxu0
        %v1625 = vadd.f32 0.0, %v1624
        %v1626 = vpop.f32.mrb[0].mxu0
        %v1627 = vadd.f32 0.0, %v1626
        %1628 = vmatprep.mubr.bf16.mxu0 %v755
        %1629 = vmatmul.mubr.bf16.gmra.mrb[0].mxu0 %v754
        %v1630 = vpop.f32.mrb[0].mxu0
        %v1631 = vadd.f32 0.0, %v1630
        %v1632 = vpop.f32.mrb[0].mxu0
        %v1633 = vadd.f32 0.0, %v1632
        %v1634 = vpop.f32.mrb[0].mxu0
        %v1635 = vadd.f32 0.0, %v1634
        %v1636 = vpop.f32.mrb[0].mxu0
        %v1637 = vadd.f32 0.0, %v1636
        %1638 = vmatprep.mubr.bf16.mxu0 %v757
        %1639 = vmatmul.mubr.bf16.gmra.mrb[0].mxu0 %v756
        %v1640 = vpop.f32.mrb[0].mxu0
        %v1641 = vadd.f32 0.0, %v1640
        %v1642 = vpop.f32.mrb[0].mxu0
        %v1643 = vadd.f32 0.0, %v1642
        %v1644 = vpop.f32.mrb[0].mxu0
        %v1645 = vadd.f32 0.0, %v1644
        %v1646 = vpop.f32.mrb[0].mxu0
        %v1647 = vadd.f32 0.0, %v1646
        %1648 = vmatprep.mubr.bf16.mxu0 %v759
        %1649 = vmatmul.mubr.bf16.gmra.mrb[0].mxu0 %v758
        %v1650 = vpop.f32.mrb[0].mxu0
        %v1651 = vadd.f32 0.0, %v1650
        %v1652 = vpop.f32.mrb[0].mxu0
        %v1653 = vadd.f32 0.0, %v1652
        %v1654 = vpop.f32.mrb[0].mxu0
        %v1655 = vadd.f32 0.0, %v1654
        %v1656 = vpop.f32.mrb[0].mxu0
        %v1657 = vadd.f32 0.0, %v1656
        %1658 = vmatprep.mubr.bf16.mxu0 %v761
        %1659 = vmatmul.mubr.bf16.gmra.mrb[0].mxu0 %v760
        %v1660 = vpop.f32.mrb[0].mxu0
        %v1661 = vadd.f32 0.0, %v1660
        %v1662 = vpop.f32.mrb[0].mxu0
        %v1663 = vadd.f32 0.0, %v1662
        %v1664 = vpop.f32.mrb[0].mxu0
        %v1665 = vadd.f32 0.0, %v1664
        %v1666 = vpop.f32.mrb[0].mxu0
        %v1667 = vadd.f32 0.0, %v1666
        %1668 = vmatprep.mubr.bf16.mxu0 %v763
        %1669 = vmatmul.mubr.bf16.gmra.mrb[0].mxu0 %v762
        %v1670 = vpop.f32.mrb[0].mxu0
        %v1671 = vadd.f32 0.0, %v1670
        %v1672 = vpop.f32.mrb[0].mxu0
        %v1673 = vadd.f32 0.0, %v1672
        %v1674 = vpop.f32.mrb[0].mxu0
        %v1675 = vadd.f32 0.0, %v1674
        %v1676 = vpop.f32.mrb[0].mxu0
        %v1677 = vadd.f32 0.0, %v1676
        %1678 = vmatprep.mubr.bf16.mxu0 %v765
        %1679 = vmatmul.mubr.bf16.gmra.mrb[0].mxu0 %v764
        %v1680 = vpop.f32.mrb[0].mxu0
        %v1681 = vadd.f32 0.0, %v1680
        %v1682 = vpop.f32.mrb[0].mxu0
        %v1683 = vadd.f32 0.0, %v1682
        %v1684 = vpop.f32.mrb[0].mxu0
        %v1685 = vadd.f32 0.0, %v1684
        %v1686 = vpop.f32.mrb[0].mxu0
        %v1687 = vadd.f32 0.0, %v1686
        %1688 = vmatprep.mubr.bf16.mxu0 %v767
        %1689 = vmatmul.mubr.bf16.gmra.mrb[0].mxu0 %v766
        %v1690 = vpop.f32.mrb[0].mxu0
        %v1691 = vadd.f32 0.0, %v1690
        %v1692 = vpop.f32.mrb[0].mxu0
        %v1693 = vadd.f32 0.0, %v1692
        %v1694 = vpop.f32.mrb[0].mxu0
        %v1695 = vadd.f32 0.0, %v1694
        %v1696 = vpop.f32.mrb[0].mxu0
        %v1697 = vadd.f32 0.0, %v1696
        %1698 = vmatprep.mubr.bf16.mxu0 %v769
        %1699 = vmatmul.mubr.bf16.gmra.mrb[0].mxu0 %v768
        %v1700 = vpop.f32.mrb[0].mxu0
        %v1701 = vadd.f32 0.0, %v1700
        %v1702 = vpop.f32.mrb[0].mxu0
        %v1703 = vadd.f32 0.0, %v1702
        %v1704 = vpop.f32.mrb[0].mxu0
        %v1705 = vadd.f32 0.0, %v1704
        %v1706 = vpop.f32.mrb[0].mxu0
        %v1707 = vadd.f32 0.0, %v1706
        %1708 = vmatprep.mubr.bf16.mxu0 %v771
        %1709 = vmatmul.mubr.bf16.gmra.mrb[0].mxu0 %v770
        %v1710 = vpop.f32.mrb[0].mxu0
        %v1711 = vadd.f32 0.0, %v1710
        %v1712 = vpop.f32.mrb[0].mxu0
        %v1713 = vadd.f32 0.0, %v1712
        %v1714 = vpop.f32.mrb[0].mxu0
        %v1715 = vadd.f32 0.0, %v1714
        %v1716 = vpop.f32.mrb[0].mxu0
        %v1717 = vadd.f32 0.0, %v1716
        %1718 = vmatprep.mubr.bf16.mxu0 %v773
        %1719 = vmatmul.mubr.bf16.gmra.mrb[0].mxu0 %v772
        %v1720 = vpop.f32.mrb[0].mxu0
        %v1721 = vadd.f32 0.0, %v1720
        %v1722 = vpop.f32.mrb[0].mxu0
        %v1723 = vadd.f32 0.0, %v1722
        %v1724 = vpop.f32.mrb[0].mxu0
        %v1725 = vadd.f32 0.0, %v1724
        %v1726 = vpop.f32.mrb[0].mxu0
        %v1727 = vadd.f32 0.0, %v1726
        %1728 = vmatprep.mubr.bf16.mxu0 %v775
        %1729 = vmatmul.mubr.bf16.gmra.mrb[0].mxu0 %v774
        %v1730 = vpop.f32.mrb[0].mxu0
        %v1731 = vadd.f32 0.0, %v1730
        %v1732 = vpop.f32.mrb[0].mxu0
        %v1733 = vadd.f32 0.0, %v1732
        %v1734 = vpop.f32.mrb[0].mxu0
        %v1735 = vadd.f32 0.0, %v1734
        %v1736 = vpop.f32.mrb[0].mxu0
        %v1737 = vadd.f32 0.0, %v1736
        %1738 = vdwg.mxu0
        %v1739 = vadd.f32 %v1308, %v1621
        %v1740 = vadd.f32 %v1310, %v1623
        %v1741 = vadd.f32 %v1312, %v1625
        %v1742 = vadd.f32 %v1314, %v1627
        %v1743 = vadd.f32 %v1318, %v1631
        %v1744 = vadd.f32 %v1320, %v1633
        %v1745 = vadd.f32 %v1322, %v1635
        %v1746 = vadd.f32 %v1324, %v1637
        %v1747 = vadd.f32 %v1328, %v1641
        %v1748 = vadd.f32 %v1330, %v1643
        %v1749 = vadd.f32 %v1332, %v1645
        %v1750 = vadd.f32 %v1334, %v1647
        %v1751 = vadd.f32 %v1338, %v1651
        %v1752 = vadd.f32 %v1340, %v1653
        %v1753 = vadd.f32 %v1342, %v1655
        %v1754 = vadd.f32 %v1344, %v1657
        %v1755 = vadd.f32 %v1348, %v1661
        %v1756 = vadd.f32 %v1350, %v1663
        %v1757 = vadd.f32 %v1352, %v1665
        %v1758 = vadd.f32 %v1354, %v1667
        %v1759 = vadd.f32 %v1358, %v1671
        %v1760 = vadd.f32 %v1360, %v1673
        %v1761 = vadd.f32 %v1362, %v1675
        %v1762 = vadd.f32 %v1364, %v1677
        %v1763 = vadd.f32 %v1368, %v1681
        %v1764 = vadd.f32 %v1370, %v1683
        %v1765 = vadd.f32 %v1372, %v1685
        %v1766 = vadd.f32 %v1374, %v1687
        %v1767 = vadd.f32 %v1378, %v1691
        %v1768 = vadd.f32 %v1380, %v1693
        %v1769 = vadd.f32 %v1382, %v1695
        %v1770 = vadd.f32 %v1384, %v1697
        %v1771 = vadd.f32 %v1388, %v1701
        %v1772 = vadd.f32 %v1390, %v1703
        %v1773 = vadd.f32 %v1392, %v1705
        %v1774 = vadd.f32 %v1394, %v1707
        %v1775 = vadd.f32 %v1398, %v1711
        %v1776 = vadd.f32 %v1400, %v1713
        %v1777 = vadd.f32 %v1402, %v1715
        %v1778 = vadd.f32 %v1404, %v1717
        %v1779 = vadd.f32 %v1408, %v1721
        %v1780 = vadd.f32 %v1410, %v1723
        %v1781 = vadd.f32 %v1412, %v1725
        %v1782 = vadd.f32 %v1414, %v1727
        %v1783 = vadd.f32 %v1418, %v1731
        %v1784 = vadd.f32 %v1420, %v1733
        %v1785 = vadd.f32 %v1422, %v1735
        %v1786 = vadd.f32 %v1424, %v1737
        %v1787 = vld [vmem:[%s3] sm:$0x3]
        %v1789 = vlaneseq
        %v1790 = vshrl.u32 %v1789, 7
        %v1791 = vsub.s32 0, %v1790
        %v1792 = vrot.slane %v1787, %v1791
        %v1793 = vlaneseq
        %v1794 = vshrl.u32 %v1793, 7
        %v1795 = vsub.s32 1, %v1794
        %v1796 = vrot.slane %v1787, %v1795
        %v1799 = vadd.f32 %v1739, %v1792
        %v1800 = vadd.f32 %v1740, %v1796
        %v1801 = vadd.f32 %v1741, %v1792
        %v1802 = vadd.f32 %v1742, %v1796
        %v1803 = vadd.f32 %v1743, %v1792
        %v1804 = vadd.f32 %v1744, %v1796
        %v1805 = vadd.f32 %v1745, %v1792
        %v1806 = vadd.f32 %v1746, %v1796
        %v1807 = vadd.f32 %v1747, %v1792
        %v1808 = vadd.f32 %v1748, %v1796
        %v1809 = vadd.f32 %v1749, %v1792
        %v1810 = vadd.f32 %v1750, %v1796
        %v1811 = vadd.f32 %v1751, %v1792
        %v1812 = vadd.f32 %v1752, %v1796
        %v1813 = vadd.f32 %v1753, %v1792
        %v1814 = vadd.f32 %v1754, %v1796
        %v1815 = vadd.f32 %v1755, %v1792
        %v1816 = vadd.f32 %v1756, %v1796
        %v1817 = vadd.f32 %v1757, %v1792
        %v1818 = vadd.f32 %v1758, %v1796
        %v1819 = vadd.f32 %v1759, %v1792
        %v1820 = vadd.f32 %v1760, %v1796
        %v1821 = vadd.f32 %v1761, %v1792
        %v1822 = vadd.f32 %v1762, %v1796
        %v1823 = vadd.f32 %v1763, %v1792
        %v1824 = vadd.f32 %v1764, %v1796
        %v1825 = vadd.f32 %v1765, %v1792
        %v1826 = vadd.f32 %v1766, %v1796
        %v1827 = vadd.f32 %v1767, %v1792
        %v1828 = vadd.f32 %v1768, %v1796
        %v1829 = vadd.f32 %v1769, %v1792
        %v1830 = vadd.f32 %v1770, %v1796
        %v1831 = vadd.f32 %v1771, %v1792
        %v1832 = vadd.f32 %v1772, %v1796
        %v1833 = vadd.f32 %v1773, %v1792
        %v1834 = vadd.f32 %v1774, %v1796
        %v1835 = vadd.f32 %v1775, %v1792
        %v1836 = vadd.f32 %v1776, %v1796
        %v1837 = vadd.f32 %v1777, %v1792
        %v1838 = vadd.f32 %v1778, %v1796
        %v1839 = vadd.f32 %v1779, %v1792
        %v1840 = vadd.f32 %v1780, %v1796
        %v1841 = vadd.f32 %v1781, %v1792
        %v1842 = vadd.f32 %v1782, %v1796
        %v1843 = vadd.f32 %v1783, %v1792
        %v1844 = vadd.f32 %v1784, %v1796
        %v1845 = vadd.f32 %v1785, %v1792
        %v1846 = vadd.f32 %v1786, %v1796
        %1847 = vst [vmem:[%s245] sm:$0xff] %v1799
        %1848 = vst [vmem:[%s245 + $0x8] sm:$0xff] %v1800
        %1849 = vst [vmem:[%s245 + $0x10] sm:$0xff] %v1801
        %1850 = vst [vmem:[%s245 + $0x18] sm:$0xff] %v1802
        %1851 = vst [vmem:[%s245 + $0x20] sm:$0xff] %v1803
        %1852 = vst [vmem:[%s245 + $0x28] sm:$0xff] %v1804
        %1853 = vst [vmem:[%s245 + $0x30] sm:$0xff] %v1805
        %1854 = vst [vmem:[%s245 + $0x38] sm:$0xff] %v1806
        %1855 = vst [vmem:[%s245 + $0x40] sm:$0xff] %v1807
        %1856 = vst [vmem:[%s245 + $0x48] sm:$0xff] %v1808
        %1857 = vst [vmem:[%s245 + $0x50] sm:$0xff] %v1809
        %1858 = vst [vmem:[%s245 + $0x58] sm:$0xff] %v1810
        %1859 = vst [vmem:[%s245 + $0x60] sm:$0xff] %v1811
        %1860 = vst [vmem:[%s245 + $0x68] sm:$0xff] %v1812
        %1861 = vst [vmem:[%s245 + $0x70] sm:$0xff] %v1813
        %1862 = vst [vmem:[%s245 + $0x78] sm:$0xff] %v1814
        %1863 = vst [vmem:[%s245 + $0x80] sm:$0xff] %v1815
        %1864 = vst [vmem:[%s245 + $0x88] sm:$0xff] %v1816
        %1865 = vst [vmem:[%s245 + $0x90] sm:$0xff] %v1817
        %1866 = vst [vmem:[%s245 + $0x98] sm:$0xff] %v1818
        %1867 = vst [vmem:[%s245 + $0xa0] sm:$0xff] %v1819
        %1868 = vst [vmem:[%s245 + $0xa8] sm:$0xff] %v1820
        %1869 = vst [vmem:[%s245 + $0xb0] sm:$0xff] %v1821
        %1870 = vst [vmem:[%s245 + $0xb8] sm:$0xff] %v1822
        %1871 = vst [vmem:[%s245 + $0xc0] sm:$0xff] %v1823
        %1872 = vst [vmem:[%s245 + $0xc8] sm:$0xff] %v1824
        %1873 = vst [vmem:[%s245 + $0xd0] sm:$0xff] %v1825
        %1874 = vst [vmem:[%s245 + $0xd8] sm:$0xff] %v1826
        %1875 = vst [vmem:[%s245 + $0xe0] sm:$0xff] %v1827
        %1876 = vst [vmem:[%s245 + $0xe8] sm:$0xff] %v1828
        %1877 = vst [vmem:[%s245 + $0xf0] sm:$0xff] %v1829
        %1878 = vst [vmem:[%s245 + $0xf8] sm:$0xff] %v1830
        %1879 = vst [vmem:[%s245 + $0x100] sm:$0xff] %v1831
        %1880 = vst [vmem:[%s245 + $0x108] sm:$0xff] %v1832
        %1881 = vst [vmem:[%s245 + $0x110] sm:$0xff] %v1833
        %1882 = vst [vmem:[%s245 + $0x118] sm:$0xff] %v1834
        %1883 = vst [vmem:[%s245 + $0x120] sm:$0xff] %v1835
        %1884 = vst [vmem:[%s245 + $0x128] sm:$0xff] %v1836
        %1885 = vst [vmem:[%s245 + $0x130] sm:$0xff] %v1837
        %1886 = vst [vmem:[%s245 + $0x138] sm:$0xff] %v1838
        %1887 = vst [vmem:[%s245 + $0x140] sm:$0xff] %v1839
        %1888 = vst [vmem:[%s245 + $0x148] sm:$0xff] %v1840
        %1889 = vst [vmem:[%s245 + $0x150] sm:$0xff] %v1841
        %1890 = vst [vmem:[%s245 + $0x158] sm:$0xff] %v1842
        %1891 = vst [vmem:[%s245 + $0x160] sm:$0xff] %v1843
        %1892 = vst [vmem:[%s245 + $0x168] sm:$0xff] %v1844
        %1893 = vst [vmem:[%s245 + $0x170] sm:$0xff] %v1845
        %1894 = vst [vmem:[%s245 + $0x178] sm:$0xff] %v1846
        %s1895 = sand.u32 %s119, 1
        %s1896 = scalar_lea.sflag [#allocation4], %s1895
        %s1897 = sand.u32 %s119, 1
        %s1898 = smul.addr %s1897, 384
        %s1899 = scalar_lea.vmem [#allocation8], %s1898
        // Predicated region
        $region49: #{tpu_custom_call.1} parent=35 // pred_check
          %p1900 = pneg %p129
        $region50: #{tpu_custom_call.1} parent=35 // pred_check_branch
          %1902 = sbr.rel (%p1900) target = $region52
        $region51: #{tpu_custom_call.1} parent=35 // pred_region
          %s1903 = smul.u32 24, %s22
          %s1905 = ssub.s32 6144, 6144
          %1906 = vsyncadd %s1896, %s1905
          %s1907 = smul.addr %s1903, 2
          %s1908 = smul.addr %s1907, 128
          %s1909 = scalar_lea.hbm %s4, %s1908
          %s1910 = sshll.u32 %s1899, 4
          %s1911 = int_to_ptr.vmem [resolvable:$true] %s1910
          %1916 = dma.vmem_to_hbm [thread:$0]  %s1911, 6144, %s1909, %s1896, 256, 256, 16
        $region52: #{tpu_custom_call.1} parent=35 // pred_fallthru
          _
      $region36: #{tpu_custom_call.1} parent=5 // pred_fallthru
        _
      %p1917 = scmp.le.s32.totalorder 2, %s17
      // Predicated region
      $region53: #{tpu_custom_call.1} parent=5 // pred_check
        %p1918 = pneg %p1917
      $region54: #{tpu_custom_call.1} parent=5 // pred_check_branch
        %1920 = sbr.rel (%p1918) target = $region56
      $region55: #{tpu_custom_call.1} parent=5 // pred_region
        %s1921 = ssub.s32 %s17, 2
        // Predicated region
        $region57: #{tpu_custom_call.1} parent=55 // pred_check
          %p1922 = pneg %p135
        $region58: #{tpu_custom_call.1} parent=55 // pred_check_branch
          %1924 = sbr.rel (%p1922) target = $region60
        $region59: #{tpu_custom_call.1} parent=55 // pred_region
          %s1925 = sand.u32 %s120, 1
          %s1926 = scalar_lea.sflag [#allocation4], %s1925
          %s1927 = sand.u32 %s120, 1
          %s1928 = smul.addr %s1927, 384
          %s1929 = scalar_lea.vmem [#allocation8], %s1928
          %1930 = dma.done %s1926, 6144
        $region60: #{tpu_custom_call.1} parent=55 // pred_fallthru
          _
      $region56: #{tpu_custom_call.1} parent=5 // pred_fallthru
        _
    $region6: #{tpu_custom_call.1} parent=1 // loop_footer
      %s21 = sadd.s32 1, %s17
    $region7: #{tpu_custom_call.1} parent=1 // loop_footer_branch
      %16 = sbr.rel target = $region3
    $region8: #{tpu_custom_call.1} parent=1 // loop_exit
      _
    %1931 = vsyncpa [#allocation3], 1
    %s1932 = scalar_lea.sflag [#allocation3], 1
    %1933 = vsyncpa %s1932, 1
    %1934 = vsyncpa [#allocation6], 1
    %1935 = vsyncpa [#allocation4], 1
    %s1936 = scalar_lea.sflag [#allocation4], 1
    %1937 = vsyncpa %s1936, 1

</llo_original>
